<compile_context>
chip_gen: v7x
topology: tpu7x:2x2x1
jax: 0.10.0
libtpu: 0.0.40
codegen_flags: <defaults>
</compile_context>

<pallas_src>
import jax
import jax.numpy as jnp
from jax.experimental import pallas as pl
from jax.experimental.pallas import tpu as pltpu

LN_EPS = 1e-5  # torch.nn.LayerNorm default


# ----------------------------- kernel -----------------------------
def _ln_silu(v, gamma, beta):
    """LayerNorm (f32) + SiLU over the real channel axis (no padding anywhere)."""
    mu = jnp.mean(v, axis=-1, keepdims=True)
    d = v - mu
    var = jnp.mean(d * d, axis=-1, keepdims=True)
    h = d * jax.lax.rsqrt(var + LN_EPS) * gamma + beta
    return h * jax.nn.sigmoid(h)          # SiLU (sigmoid goes to the EUP slot)


def _make_kernel(has_skip):
    def body(x_ref, cond_ref, vin_ref, vout_ref, w1t_ref, wct_ref, w2t_ref,
             wst_ref, out_ref):
        x = x_ref[...].astype(jnp.float32)

        g1, beta1 = vin_ref[0:1, :], vin_ref[1:2, :]
        g2, beta2 = vout_ref[0:1, :], vout_ref[1:2, :]
        b1, b2 = vout_ref[2:3, :], vout_ref[3:4, :]

        # ---- norm1 + SiLU (f32) ----
        h1 = _ln_silu(x, g1, beta1)

        # ---- lin1 + cond_map as two accumulating bf16 dots (f32 accumulation) ----
        h = (jnp.dot(h1.astype(jnp.bfloat16), w1t_ref[...],
                     preferred_element_type=jnp.float32)
             + jnp.dot(cond_ref[...].astype(jnp.bfloat16), wct_ref[...],
                       preferred_element_type=jnp.float32)
             + b1)

        # ---- norm2 + SiLU (f32) ----
        h2 = _ln_silu(h, g2, beta2)
        # TODO(synk): F.dropout(p=0.1, training=True) implemented as identity
        # (inference semantics); torch training-mode dropout RNG is not reproduced.

        # ---- lin2 (+ fused skip bias b2+bs) + skip ----
        y = jnp.dot(h2.astype(jnp.bfloat16), w2t_ref[...],
                    preferred_element_type=jnp.float32) + b2
        if wst_ref is not None:            # linear skip (in_ch != out_ch), bf16 MXU
            y = y + jnp.dot(x.astype(jnp.bfloat16), wst_ref[...],
                            preferred_element_type=jnp.float32)
        else:                              # nn.Identity skip: add f32 residual directly
            y = y + x

        out_ref[...] = y.astype(out_ref.dtype)

    if has_skip:
        def kernel(x_ref, cond_ref, vin_ref, vout_ref, w1t_ref, wct_ref, w2t_ref,
                   wst_ref, out_ref):
            body(x_ref, cond_ref, vin_ref, vout_ref, w1t_ref, wct_ref, w2t_ref,
                 wst_ref, out_ref)
    else:
        def kernel(x_ref, cond_ref, vin_ref, vout_ref, w1t_ref, wct_ref, w2t_ref,
                   out_ref):
            body(x_ref, cond_ref, vin_ref, vout_ref, w1t_ref, wct_ref, w2t_ref,
                 None, out_ref)
    return kernel


# --------------------- one-time parameter packing ---------------------
def prepare_params(p):
    """Transpose / bf16-cast the matmul weights and stack the 1-D params ONCE."""
    out_ch, in_ch = p["w1"].shape
    cond_dim = p["wc"].shape[1]
    has_skip = "ws" in p                  # module uses nn.Identity() when in_ch == out_ch

    tbf = lambda w: jnp.asarray(w).T.astype(jnp.bfloat16)   # [out, in] -> [in, out] bf16
    f32 = lambda v: jnp.asarray(v, jnp.float32)

    b2 = f32(p["b2"]) + (f32(p["bs"]) if has_skip else 0.0)  # fold skip bias into b2
    prep = dict(
        in_ch=in_ch, out_ch=out_ch, cond_dim=cond_dim, has_skip=has_skip,
        w1t=tbf(p["w1"]), wct=tbf(p["wc"]), w2t=tbf(p["w2"]),
        vin=jnp.stack([f32(p["g1"]), f32(p["beta1"])]),                     # [2, in_ch]
        vout=jnp.stack([f32(p["g2"]), f32(p["beta2"]), f32(p["b1"]), b2]),  # [4, out_ch]
    )
    if has_skip:
        prep["wst"] = tbf(p["ws"])
    return prep


# ----------------------------- wrapper -----------------------------
def resnet_block(x, cond, prep, *, tb=None, out_dtype=None):
    B, in_ch = x.shape
    out_ch, cond_dim = prep["out_ch"], prep["cond_dim"]
    assert in_ch == prep["in_ch"] and cond.shape == (B, cond_dim)
    out_dtype = out_dtype or x.dtype       # pass bf16 here if the consumer accepts it
    has_skip = prep["has_skip"]

    # ---- physical VMEM (v7x: 64 MiB/TC, v5e/v6e: 128 MiB) ----
    try:
        vmem_cap = int(pltpu.get_tpu_info().vmem_capacity_bytes)
    except Exception:
        vmem_cap = 64 << 20                # conservative default (v7x per-TC VMEM)

    pkeys = ["w1t", "wct", "w2t", "vin", "vout"] + (["wst"] if has_skip else [])
    wbytes = 2 * sum(prep[k].size * prep[k].dtype.itemsize for k in pkeys)  # 2 bufs each

    out_isz = jnp.dtype(out_dtype).itemsize
    # per batch-row VMEM: double-buffered x/cond/out tiles + f32 intermediates
    row_bytes = (2 * x.dtype.itemsize * in_ch
                 + 2 * cond.dtype.itemsize * cond_dim
                 + 2 * out_isz * out_ch
                 + 4 * 4 * max(in_ch, out_ch))

    if tb is None:
        budget = max((6 * vmem_cap) // 10 - wbytes - (4 << 20), 8 * row_bytes)
        max_rows = budget // row_bytes
        cands = [t for t in (1024, 512, 256, 128, 64, 32, 16, 8)
                 if B % t == 0 and t <= B and t <= max_rows]
        # prefer >= 2 grid steps so the "parallel" batch axis can split across the
        # two TensorCores on v7x; a single extra step is noise on v5e/v6e.
        multi = [t for t in cands if t < B]
        tb = multi[0] if multi else (cands[0] if cands else B)
    grid = pl.cdiv(B, tb)
    assert B % tb == 0

    est = tb * row_bytes + wbytes + (4 << 20)
    vmem_limit = int(min(max(2 * est, 32 << 20), (3 * vmem_cap) // 4))

    row = lambda i: (i, 0)    # activation tiles walk the batch axis
    rep = lambda i: (0, 0)    # parameters: same block every step -> stay resident

    in_specs = [
        pl.BlockSpec((tb, in_ch), row),          # x     (unpadded, full feature width)
        pl.BlockSpec((tb, cond_dim), row),       # cond  (unpadded)
        pl.BlockSpec((2, in_ch), rep),           # [g1; beta1]
        pl.BlockSpec((4, out_ch), rep),          # [g2; beta2; b1; b2(+bs)]
        pl.BlockSpec((in_ch, out_ch), rep),      # w1^T  (bf16)
        pl.BlockSpec((cond_dim, out_ch), rep),   # wc^T  (bf16)
        pl.BlockSpec((out_ch, out_ch), rep),     # w2^T  (bf16)
    ]
    args = [x, cond, prep["vin"], prep["vout"], prep["w1t"], prep["wct"], prep["w2t"]]
    if has_skip:
        in_specs.append(pl.BlockSpec((in_ch, out_ch), rep))   # ws^T (bf16)
        args.append(prep["wst"])

    return pl.pallas_call(
        _make_kernel(has_skip),
        out_shape=jax.ShapeDtypeStruct((B, out_ch), out_dtype),   # no output slice
        grid_spec=pltpu.PrefetchScalarGridSpec(
            num_scalar_prefetch=0,
            grid=(grid,),
            in_specs=in_specs,
            out_specs=pl.BlockSpec((tb, out_ch), row),
        ),
        compiler_params=pltpu.CompilerParams(
            dimension_semantics=("parallel",),
            vmem_limit_bytes=vmem_limit),
    )(*args)


# --------------- deterministic init (mirrors weight_init kaiming_normal) ---------------
def _kaiming_normal(key, shape, fan_in):
    return jnp.sqrt(1.0 / fan_in) * jax.random.normal(key, shape, dtype=jnp.float32)


def make_params(key, in_ch, out_ch, cond_dim):
    ks = jax.random.split(key, 7)
    p = dict(
        w1=_kaiming_normal(ks[0], (out_ch, in_ch), in_ch),
        b1=_kaiming_normal(ks[1], (out_ch,), in_ch) * 0.0,
        w2=_kaiming_normal(ks[2], (out_ch, out_ch), out_ch),
        b2=_kaiming_normal(ks[3], (out_ch,), out_ch) * 0.0,
        wc=_kaiming_normal(ks[6], (out_ch, cond_dim), cond_dim) * 0.0,   # init_weight=0
        g1=jnp.ones((in_ch,), jnp.float32), beta1=jnp.zeros((in_ch,), jnp.float32),
        g2=jnp.ones((out_ch,), jnp.float32), beta2=jnp.zeros((out_ch,), jnp.float32),
    )
    if in_ch != out_ch:                   # module: skip is Linear only when shapes differ
        p["ws"] = _kaiming_normal(ks[4], (out_ch, in_ch), in_ch)
        p["bs"] = _kaiming_normal(ks[5], (out_ch,), in_ch) * 0.0
    return p


def reference(x, cond, p):
    def ln(v, g, b):
        mu = jnp.mean(v, -1, keepdims=True)
        var = jnp.mean(jnp.square(v - mu), -1, keepdims=True)
        return (v - mu) * jax.lax.rsqrt(var + LN_EPS) * g + b
    silu = lambda v: v * jax.nn.sigmoid(v)
    h = silu(ln(x, p["g1"], p["beta1"]))
    h = h @ p["w1"].T + p["b1"]
    h = h + cond @ p["wc"].T
    h = silu(ln(h, p["g2"], p["beta2"]))
    h = h @ p["w2"].T + p["b2"]
    skip = (x @ p["ws"].T + p["bs"]) if "ws" in p else x
    return h + skip


if __name__ == "__main__":
    key = jax.random.PRNGKey(0)

    def run_case(B, in_ch, out_ch, cond_dim, case_key):
        kx, kc, kp, kz = jax.random.split(case_key, 4)
        x = jax.random.normal(kx, (B, in_ch), dtype=jnp.float32)
        cond = jax.random.normal(kc, (B, cond_dim), dtype=jnp.float32)
        params = make_params(kp, in_ch, out_ch, cond_dim)

        # The module's init makes wc and all biases exactly zero; perturb them so the
        # fused cond-map / bias-folding wiring is actually exercised by the check.
        kws = jax.random.split(kz, 4)
        params["wc"] = 0.1 * jax.random.normal(kws[0], (out_ch, cond_dim), jnp.float32)
        params["b1"] = 0.1 * jax.random.normal(kws[1], (out_ch,), jnp.float32)
        params["b2"] = 0.1 * jax.random.normal(kws[2], (out_ch,), jnp.float32)
        if "bs" in params:
            params["bs"] = 0.1 * jax.random.normal(kws[3], (out_ch,), jnp.float32)

        prep = prepare_params(params)     # one-time: transpose / fuse / bf16-cast
        out = jax.block_until_ready(resnet_block(x, cond, prep))
        ref = reference(x, cond, params)
        assert out.shape == (B, out_ch), (out.shape, (B, out_ch))
        # bf16 MXU operands with f32 accumulation -> relaxed tolerance vs f32 reference.
        err = float(jnp.max(jnp.abs(out - ref)))
        assert jnp.allclose(out, ref, atol=5e-2, rtol=5e-2), f"mismatch, max err {err}"

    k1, k2 = jax.random.split(key)
    run_case(256, 32, 64, 16, k1)   # linear-skip path (in_ch != out_ch), grid = 2
    run_case(64, 64, 64, 16, k2)    # Identity-skip path (f32 residual add)
    print("KERNEL_OK")
</pallas_src>

<mosaic_0001>
module attributes {stable_mosaic.version = 11 : i64} {
  func.func @kernel(%arg0: i32, %arg1: memref<128x32xf32, #tpu.memory_space<vmem>>, %arg2: memref<128x16xf32, #tpu.memory_space<vmem>>, %arg3: memref<2x32xf32, #tpu.memory_space<vmem>>, %arg4: memref<4x64xf32, #tpu.memory_space<vmem>>, %arg5: memref<32x64xbf16, #tpu.memory_space<vmem>>, %arg6: memref<16x64xbf16, #tpu.memory_space<vmem>>, %arg7: memref<64x64xbf16, #tpu.memory_space<vmem>>, %arg8: memref<32x64xbf16, #tpu.memory_space<vmem>>, %arg9: memref<128x64xf32, #tpu.memory_space<vmem>>) attributes {dimension_semantics = [#tpu.dimension_semantics<parallel>], iteration_bounds = array<i64: 2>, scalar_prefetch = 0 : i64, scratch_operands = 0 : i64, tpu.core_type = #tpu.core_type<tc>, window_params = [{transform_indices = @transform_0, window_bounds = array<i64: 128, 32>}, {transform_indices = @transform_1, window_bounds = array<i64: 128, 16>}, {pipeline_mode = #tpu.pipeline_mode<synchronous>, transform_indices = @transform_2, window_bounds = array<i64: 2, 32>}, {pipeline_mode = #tpu.pipeline_mode<synchronous>, transform_indices = @transform_3, window_bounds = array<i64: 4, 64>}, {pipeline_mode = #tpu.pipeline_mode<synchronous>, transform_indices = @transform_4, window_bounds = array<i64: 32, 64>}, {pipeline_mode = #tpu.pipeline_mode<synchronous>, transform_indices = @transform_5, window_bounds = array<i64: 16, 64>}, {pipeline_mode = #tpu.pipeline_mode<synchronous>, transform_indices = @transform_6, window_bounds = array<i64: 64, 64>}, {pipeline_mode = #tpu.pipeline_mode<synchronous>, transform_indices = @transform_7, window_bounds = array<i64: 32, 64>}, {transform_indices = @transform_8, window_bounds = array<i64: 128, 64>}]} {
    %c0 = arith.constant 0 : index
    %c0_0 = arith.constant 0 : index
    %0 = vector.load %arg1[%c0, %c0_0] : memref<128x32xf32, #tpu.memory_space<vmem>>, vector<128x32xf32>
    %c0_1 = arith.constant 0 : index
    %c0_2 = arith.constant 0 : index
    %1 = vector.load %arg3[%c0_1, %c0_2] : memref<2x32xf32, #tpu.memory_space<vmem>>, vector<1x32xf32>
    %c1 = arith.constant 1 : index
    %c0_3 = arith.constant 0 : index
    %2 = vector.load %arg3[%c1, %c0_3] : memref<2x32xf32, #tpu.memory_space<vmem>>, vector<1x32xf32>
    %c0_4 = arith.constant 0 : index
    %c0_5 = arith.constant 0 : index
    %3 = vector.load %arg4[%c0_4, %c0_5] : memref<4x64xf32, #tpu.memory_space<vmem>>, vector<1x64xf32>
    %c1_6 = arith.constant 1 : index
    %c0_7 = arith.constant 0 : index
    %4 = vector.load %arg4[%c1_6, %c0_7] : memref<4x64xf32, #tpu.memory_space<vmem>>, vector<1x64xf32>
    %c2 = arith.constant 2 : index
    %c0_8 = arith.constant 0 : index
    %5 = vector.load %arg4[%c2, %c0_8] : memref<4x64xf32, #tpu.memory_space<vmem>>, vector<1x64xf32>
    %c3 = arith.constant 3 : index
    %c0_9 = arith.constant 0 : index
    %6 = vector.load %arg4[%c3, %c0_9] : memref<4x64xf32, #tpu.memory_space<vmem>>, vector<1x64xf32>
    %cst = arith.constant dense<0.000000e+00> : vector<128xf32>
    %7 = vector.multi_reduction <add>, %0, %cst [1] : vector<128x32xf32> to vector<128xf32>
    %8 = vector.shape_cast %7 : vector<128xf32> to vector<128x1xf32>
    %cst_10 = arith.constant 3.200000e+01 : f32
    %9 = vector.broadcast %cst_10 : f32 to vector<128x1xf32>
    %10 = arith.divf %8, %9 : vector<128x1xf32>
    %11 = vector.broadcast %10 : vector<128x1xf32> to vector<128x32xf32>
    %12 = arith.subf %0, %11 : vector<128x32xf32>
    %13 = arith.mulf %12, %12 : vector<128x32xf32>
    %cst_11 = arith.constant dense<0.000000e+00> : vector<128xf32>
    %14 = vector.multi_reduction <add>, %13, %cst_11 [1] : vector<128x32xf32> to vector<128xf32>
    %15 = vector.shape_cast %14 : vector<128xf32> to vector<128x1xf32>
    %cst_12 = arith.constant 3.200000e+01 : f32
    %16 = vector.broadcast %cst_12 : f32 to vector<128x1xf32>
    %17 = arith.divf %15, %16 : vector<128x1xf32>
    %cst_13 = arith.constant 9.99999974E-6 : f32
    %18 = vector.broadcast %cst_13 : f32 to vector<128x1xf32>
    %19 = arith.addf %17, %18 : vector<128x1xf32>
    %20 = math.rsqrt %19 : vector<128x1xf32>
    %21 = vector.broadcast %20 : vector<128x1xf32> to vector<128x32xf32>
    %22 = arith.mulf %12, %21 : vector<128x32xf32>
    %23 = vector.broadcast %1 : vector<1x32xf32> to vector<128x32xf32>
    %24 = arith.mulf %22, %23 : vector<128x32xf32>
    %25 = vector.broadcast %2 : vector<1x32xf32> to vector<128x32xf32>
    %26 = arith.addf %24, %25 : vector<128x32xf32>
    %27 = arith.negf %26 : vector<128x32xf32>
    %28 = math.exp %27 : vector<128x32xf32>
    %cst_14 = arith.constant 1.000000e+00 : f32
    %29 = vector.broadcast %cst_14 : f32 to vector<128x32xf32>
    %30 = arith.addf %29, %28 : vector<128x32xf32>
    %31 = arith.divf %29, %30 : vector<128x32xf32>
    %32 = arith.mulf %26, %31 : vector<128x32xf32>
    %33 = arith.truncf %32 : vector<128x32xf32> to vector<128x32xbf16>
    %c0_15 = arith.constant 0 : index
    %c0_16 = arith.constant 0 : index
    %34 = vector.load %arg5[%c0_15, %c0_16] : memref<32x64xbf16, #tpu.memory_space<vmem>>, vector<32x64xbf16>
    %cst_17 = arith.constant dense<0.000000e+00> : vector<128x64xf32>
    %35 = tpu.matmul %33, %34, %cst_17 {dimension_numbers = #tpu.dot_dimension_numbers<[1], [0], [0], [1], [0, 0, 1, 1], [], []>} : vector<128x32xbf16>, vector<32x64xbf16>, vector<128x64xf32> -> vector<128x64xf32>
    %c0_18 = arith.constant 0 : index
    %c0_19 = arith.constant 0 : index
    %36 = vector.load %arg2[%c0_18, %c0_19] : memref<128x16xf32, #tpu.memory_space<vmem>>, vector<128x16xf32>
    %37 = arith.truncf %36 : vector<128x16xf32> to vector<128x16xbf16>
    %c0_20 = arith.constant 0 : index
    %c0_21 = arith.constant 0 : index
    %38 = vector.load %arg6[%c0_20, %c0_21] : memref<16x64xbf16, #tpu.memory_space<vmem>>, vector<16x64xbf16>
    %cst_22 = arith.constant dense<0.000000e+00> : vector<128x64xf32>
    %39 = tpu.matmul %37, %38, %cst_22 {dimension_numbers = #tpu.dot_dimension_numbers<[1], [0], [0], [1], [0, 0, 1, 1], [], []>} : vector<128x16xbf16>, vector<16x64xbf16>, vector<128x64xf32> -> vector<128x64xf32>
    %40 = arith.addf %35, %39 : vector<128x64xf32>
    %41 = vector.broadcast %5 : vector<1x64xf32> to vector<128x64xf32>
    %42 = arith.addf %40, %41 : vector<128x64xf32>
    %cst_23 = arith.constant dense<0.000000e+00> : vector<128xf32>
    %43 = vector.multi_reduction <add>, %42, %cst_23 [1] : vector<128x64xf32> to vector<128xf32>
    %44 = vector.shape_cast %43 : vector<128xf32> to vector<128x1xf32>
    %cst_24 = arith.constant 6.400000e+01 : f32
    %45 = vector.broadcast %cst_24 : f32 to vector<128x1xf32>
    %46 = arith.divf %44, %45 : vector<128x1xf32>
    %47 = vector.broadcast %46 : vector<128x1xf32> to vector<128x64xf32>
    %48 = arith.subf %42, %47 : vector<128x64xf32>
    %49 = arith.mulf %48, %48 : vector<128x64xf32>
    %cst_25 = arith.constant dense<0.000000e+00> : vector<128xf32>
    %50 = vector.multi_reduction <add>, %49, %cst_25 [1] : vector<128x64xf32> to vector<128xf32>
    %51 = vector.shape_cast %50 : vector<128xf32> to vector<128x1xf32>
    %cst_26 = arith.constant 6.400000e+01 : f32
    %52 = vector.broadcast %cst_26 : f32 to vector<128x1xf32>
    %53 = arith.divf %51, %52 : vector<128x1xf32>
    %cst_27 = arith.constant 9.99999974E-6 : f32
    %54 = vector.broadcast %cst_27 : f32 to vector<128x1xf32>
    %55 = arith.addf %53, %54 : vector<128x1xf32>
    %56 = math.rsqrt %55 : vector<128x1xf32>
    %57 = vector.broadcast %56 : vector<128x1xf32> to vector<128x64xf32>
    %58 = arith.mulf %48, %57 : vector<128x64xf32>
    %59 = vector.broadcast %3 : vector<1x64xf32> to vector<128x64xf32>
    %60 = arith.mulf %58, %59 : vector<128x64xf32>
    %61 = vector.broadcast %4 : vector<1x64xf32> to vector<128x64xf32>
    %62 = arith.addf %60, %61 : vector<128x64xf32>
    %63 = arith.negf %62 : vector<128x64xf32>
    %64 = math.exp %63 : vector<128x64xf32>
    %cst_28 = arith.constant 1.000000e+00 : f32
    %65 = vector.broadcast %cst_28 : f32 to vector<128x64xf32>
    %66 = arith.addf %65, %64 : vector<128x64xf32>
    %67 = arith.divf %65, %66 : vector<128x64xf32>
    %68 = arith.mulf %62, %67 : vector<128x64xf32>
    %69 = arith.truncf %68 : vector<128x64xf32> to vector<128x64xbf16>
    %c0_29 = arith.constant 0 : index
    %c0_30 = arith.constant 0 : index
    %70 = vector.load %arg7[%c0_29, %c0_30] : memref<64x64xbf16, #tpu.memory_space<vmem>>, vector<64x64xbf16>
    %cst_31 = arith.constant dense<0.000000e+00> : vector<128x64xf32>
    %71 = tpu.matmul %69, %70, %cst_31 {dimension_numbers = #tpu.dot_dimension_numbers<[1], [0], [0], [1], [0, 0, 1, 1], [], []>} : vector<128x64xbf16>, vector<64x64xbf16>, vector<128x64xf32> -> vector<128x64xf32>
    %72 = vector.broadcast %6 : vector<1x64xf32> to vector<128x64xf32>
    %73 = arith.addf %71, %72 : vector<128x64xf32>
    %74 = arith.truncf %0 : vector<128x32xf32> to vector<128x32xbf16>
    %c0_32 = arith.constant 0 : index
    %c0_33 = arith.constant 0 : index
    %75 = vector.load %arg8[%c0_32, %c0_33] : memref<32x64xbf16, #tpu.memory_space<vmem>>, vector<32x64xbf16>
    %cst_34 = arith.constant dense<0.000000e+00> : vector<128x64xf32>
    %76 = tpu.matmul %74, %75, %cst_34 {dimension_numbers = #tpu.dot_dimension_numbers<[1], [0], [0], [1], [0, 0, 1, 1], [], []>} : vector<128x32xbf16>, vector<32x64xbf16>, vector<128x64xf32> -> vector<128x64xf32>
    %77 = arith.addf %73, %76 : vector<128x64xf32>
    %c0_35 = arith.constant 0 : index
    %c0_36 = arith.constant 0 : index
    %78 = vector.load %arg9[%c0_35, %c0_36] : memref<128x64xf32, #tpu.memory_space<vmem>>, vector<128x64xf32>
    tpu.vector_store %arg9[%c0_35, %c0_36], %77 {strides = array<i32>} : memref<128x64xf32, #tpu.memory_space<vmem>>, vector<128x64xf32>,
    return
  }
  func.func @transform_0(%arg0: i32) -> (i32, i32) {
    %c0_i32 = arith.constant 0 : i32
    %c0_i32_0 = arith.constant 0 : i32
    return %arg0, %c0_i32 : i32, i32
  }
  func.func @transform_1(%arg0: i32) -> (i32, i32) {
    %c0_i32 = arith.constant 0 : i32
    %c0_i32_0 = arith.constant 0 : i32
    return %arg0, %c0_i32 : i32, i32
  }
  func.func @transform_2(%arg0: i32) -> (i32, i32) {
    %c0_i32 = arith.constant 0 : i32
    %c0_i32_0 = arith.constant 0 : i32
    %c0_i32_1 = arith.constant 0 : i32
    return %c0_i32, %c0_i32_0 : i32, i32
  }
  func.func @transform_3(%arg0: i32) -> (i32, i32) {
    %c0_i32 = arith.constant 0 : i32
    %c0_i32_0 = arith.constant 0 : i32
    %c0_i32_1 = arith.constant 0 : i32
    return %c0_i32, %c0_i32_0 : i32, i32
  }
  func.func @transform_4(%arg0: i32) -> (i32, i32) {
    %c0_i32 = arith.constant 0 : i32
    %c0_i32_0 = arith.constant 0 : i32
    %c0_i32_1 = arith.constant 0 : i32
    return %c0_i32, %c0_i32_0 : i32, i32
  }
  func.func @transform_5(%arg0: i32) -> (i32, i32) {
    %c0_i32 = arith.constant 0 : i32
    %c0_i32_0 = arith.constant 0 : i32
    %c0_i32_1 = arith.constant 0 : i32
    return %c0_i32, %c0_i32_0 : i32, i32
  }
  func.func @transform_6(%arg0: i32) -> (i32, i32) {
    %c0_i32 = arith.constant 0 : i32
    %c0_i32_0 = arith.constant 0 : i32
    %c0_i32_1 = arith.constant 0 : i32
    return %c0_i32, %c0_i32_0 : i32, i32
  }
  func.func @transform_7(%arg0: i32) -> (i32, i32) {
    %c0_i32 = arith.constant 0 : i32
    %c0_i32_0 = arith.constant 0 : i32
    %c0_i32_1 = arith.constant 0 : i32
    return %c0_i32, %c0_i32_0 : i32, i32
  }
  func.func @transform_8(%arg0: i32) -> (i32, i32) {
    %c0_i32 = arith.constant 0 : i32
    %c0_i32_0 = arith.constant 0 : i32
    return %arg0, %c0_i32 : i32, i32
  }
}

</mosaic_0001>

<llo_original>
// kernel: tpu_custom_call.1
$region0: #{tpu_custom_call.1}
  #allocation0 [shape = 'u32[]', space=smem, size = 0x4, offset = 0x4, fixed_abs, tag = 'smem constant byte address 0x4 - core index']
  #allocation1 [shape = 'u32[144,128]{1,0:T(1,128)}', space=vmem, size = 0x12000, scoped, tag = 'internal scratch']
  %s0 = inlined_call_operand.vmem [shape: f32[256,32], index: 0, kind: input, shape index: {}]
  %s1 = inlined_call_operand.vmem [shape: f32[256,16], index: 1, kind: input, shape index: {}]
  %s2 = inlined_call_operand.vmem [shape: f32[2,32], index: 2, kind: input, shape index: {}]
  %s3 = inlined_call_operand.vmem [shape: f32[4,64], index: 3, kind: input, shape index: {}]
  %s4 = inlined_call_operand.vmem [shape: bf16[32,64], index: 4, kind: input, shape index: {}]
  %s5 = inlined_call_operand.vmem [shape: bf16[16,64], index: 5, kind: input, shape index: {}]
  %s6 = inlined_call_operand.vmem [shape: bf16[64,64], index: 6, kind: input, shape index: {}]
  %s7 = inlined_call_operand.vmem [shape: bf16[32,64], index: 7, kind: input, shape index: {}]
  %s8 = inlined_call_operand.vmem [shape: f32[256,64], index: 8, kind: output, shape index: {}]
  %s9 = sld [smem:[#allocation0]]
  $region65: #{tpu_custom_call.1} parent=0
    _
  %s11 = ssub.s32 1, %s9
  %s12 = scalar_select 0, %s11, %s9
  loop: start=0, step=1, limit=4
  $region2: #{tpu_custom_call.1} parent=0 // loop_pre_header
    _
  $region3: #{tpu_custom_call.1} parent=0 // loop_header
    %s14 = sphi 0, %s18
    %p15 = scmp.ge.s32.totalorder %s14, 4
    %s24 = sphi 0, %s26
    %s27 = sphi 0, %s24
    %s28 = sphi 0, %s27
    %s44 = sphi 0, %s28
    %s50 = sphi 0, %s52
    %s53 = sphi 0, %s50
    %s54 = sphi 0, %s53
    %s70 = sphi 0, %s54
    %s74 = sphi 0, %s74
    %s76 = sphi 0, %s74
    %s77 = sphi 0, %s76
    %s91 = sphi 0, %s77
    %s95 = sphi 0, %s95
    %s97 = sphi 0, %s95
    %s98 = sphi 0, %s97
    %s112 = sphi 0, %s98
    %s116 = sphi 0, %s116
    %s118 = sphi 0, %s116
    %s119 = sphi 0, %s118
    %s133 = sphi 0, %s119
    %s137 = sphi 0, %s137
    %s139 = sphi 0, %s137
    %s140 = sphi 0, %s139
    %s154 = sphi 0, %s140
    %s158 = sphi 0, %s158
    %s160 = sphi 0, %s158
    %s161 = sphi 0, %s160
    %s175 = sphi 0, %s161
    %s179 = sphi 0, %s179
    %s181 = sphi 0, %s179
    %s182 = sphi 0, %s181
    %s196 = sphi 0, %s182
    %s202 = sphi 0, %s204
    %s205 = sphi 0, %s202
    %s206 = sphi 0, %s205
    %s222 = sphi 0, %s206
  $region4: #{tpu_custom_call.1} parent=0 // loop_header_branch
    %17 = sbr.rel (%p15) target = $region8
  $region5: #{tpu_custom_call.1} parent=0 // loop_body
    %s19 = ssub.s32 %s14, 1
    %s20 = ssub.s32 %s14, 2
    %s21 = sadd.s32 %s14, 1
    %s22 = ssub.s32 %s14, %s21
    %p23 = scmp.eq.s32.totalorder %s22, 0
    %s25 = sadd.s32 %s24, 1
    %s26 = scalar_select %p23, %s24, %s25
    %p29 = pneg %p23
    %p30 = scmp.eq.s32.totalorder %s14, 1
    %p31 = por %p29, %p30
    %p32 = scmp.ne.s32.totalorder %s24, %s27
    %p33 = scmp.eq.s32.totalorder %s14, 0
    %p34 = por %p32, %p33
    %p35 = scmp.ne.s32.totalorder %s24, %s27
    %p36 = scmp.eq.s32.totalorder %s19, 1
    %p37 = por %p35, %p36
    %p38 = scmp.ne.s32.totalorder %s27, %s28
    %p39 = scmp.eq.s32.totalorder %s19, 0
    %p40 = por %p38, %p39
    %p41 = scmp.ne.s32.totalorder %s27, %s28
    %p42 = scmp.eq.s32.totalorder %s20, 1
    %p43 = por %p41, %p42
    %p45 = scmp.ne.s32.totalorder %s28, %s44
    %p46 = scmp.eq.s32.totalorder %s20, 0
    %p47 = por %p45, %p46
    %s48 = ssub.s32 %s14, %s21
    %p49 = scmp.eq.s32.totalorder %s48, 0
    %s51 = sadd.s32 %s50, 1
    %s52 = scalar_select %p49, %s50, %s51
    %p55 = pneg %p49
    %p56 = scmp.eq.s32.totalorder %s14, 1
    %p57 = por %p55, %p56
    %p58 = scmp.ne.s32.totalorder %s50, %s53
    %p59 = scmp.eq.s32.totalorder %s14, 0
    %p60 = por %p58, %p59
    %p61 = scmp.ne.s32.totalorder %s50, %s53
    %p62 = scmp.eq.s32.totalorder %s19, 1
    %p63 = por %p61, %p62
    %p64 = scmp.ne.s32.totalorder %s53, %s54
    %p65 = scmp.eq.s32.totalorder %s19, 0
    %p66 = por %p64, %p65
    %p67 = scmp.ne.s32.totalorder %s53, %s54
    %p68 = scmp.eq.s32.totalorder %s20, 1
    %p69 = por %p67, %p68
    %p71 = scmp.ne.s32.totalorder %s54, %s70
    %p72 = scmp.eq.s32.totalorder %s20, 0
    %p73 = por %p71, %p72
    %s75 = sadd.s32 %s74, 1
    %p78 = scmp.eq.s32.totalorder %s14, 1
    %p79 = scmp.ne.s32.totalorder %s74, %s76
    %p80 = scmp.eq.s32.totalorder %s14, 0
    %p81 = por %p79, %p80
    %p82 = scmp.ne.s32.totalorder %s74, %s76
    %p83 = scmp.eq.s32.totalorder %s19, 1
    %p84 = por %p82, %p83
    %p85 = scmp.ne.s32.totalorder %s76, %s77
    %p86 = scmp.eq.s32.totalorder %s19, 0
    %p87 = por %p85, %p86
    %p88 = scmp.ne.s32.totalorder %s76, %s77
    %p89 = scmp.eq.s32.totalorder %s20, 1
    %p90 = por %p88, %p89
    %p92 = scmp.ne.s32.totalorder %s77, %s91
    %p93 = scmp.eq.s32.totalorder %s20, 0
    %p94 = por %p92, %p93
    %s96 = sadd.s32 %s95, 1
    %p99 = scmp.eq.s32.totalorder %s14, 1
    %p100 = scmp.ne.s32.totalorder %s95, %s97
    %p101 = scmp.eq.s32.totalorder %s14, 0
    %p102 = por %p100, %p101
    %p103 = scmp.ne.s32.totalorder %s95, %s97
    %p104 = scmp.eq.s32.totalorder %s19, 1
    %p105 = por %p103, %p104
    %p106 = scmp.ne.s32.totalorder %s97, %s98
    %p107 = scmp.eq.s32.totalorder %s19, 0
    %p108 = por %p106, %p107
    %p109 = scmp.ne.s32.totalorder %s97, %s98
    %p110 = scmp.eq.s32.totalorder %s20, 1
    %p111 = por %p109, %p110
    %p113 = scmp.ne.s32.totalorder %s98, %s112
    %p114 = scmp.eq.s32.totalorder %s20, 0
    %p115 = por %p113, %p114
    %s117 = sadd.s32 %s116, 1
    %p120 = scmp.eq.s32.totalorder %s14, 1
    %p121 = scmp.ne.s32.totalorder %s116, %s118
    %p122 = scmp.eq.s32.totalorder %s14, 0
    %p123 = por %p121, %p122
    %p124 = scmp.ne.s32.totalorder %s116, %s118
    %p125 = scmp.eq.s32.totalorder %s19, 1
    %p126 = por %p124, %p125
    %p127 = scmp.ne.s32.totalorder %s118, %s119
    %p128 = scmp.eq.s32.totalorder %s19, 0
    %p129 = por %p127, %p128
    %p130 = scmp.ne.s32.totalorder %s118, %s119
    %p131 = scmp.eq.s32.totalorder %s20, 1
    %p132 = por %p130, %p131
    %p134 = scmp.ne.s32.totalorder %s119, %s133
    %p135 = scmp.eq.s32.totalorder %s20, 0
    %p136 = por %p134, %p135
    %s138 = sadd.s32 %s137, 1
    %p141 = scmp.eq.s32.totalorder %s14, 1
    %p142 = scmp.ne.s32.totalorder %s137, %s139
    %p143 = scmp.eq.s32.totalorder %s14, 0
    %p144 = por %p142, %p143
    %p145 = scmp.ne.s32.totalorder %s137, %s139
    %p146 = scmp.eq.s32.totalorder %s19, 1
    %p147 = por %p145, %p146
    %p148 = scmp.ne.s32.totalorder %s139, %s140
    %p149 = scmp.eq.s32.totalorder %s19, 0
    %p150 = por %p148, %p149
    %p151 = scmp.ne.s32.totalorder %s139, %s140
    %p152 = scmp.eq.s32.totalorder %s20, 1
    %p153 = por %p151, %p152
    %p155 = scmp.ne.s32.totalorder %s140, %s154
    %p156 = scmp.eq.s32.totalorder %s20, 0
    %p157 = por %p155, %p156
    %s159 = sadd.s32 %s158, 1
    %p162 = scmp.eq.s32.totalorder %s14, 1
    %p163 = scmp.ne.s32.totalorder %s158, %s160
    %p164 = scmp.eq.s32.totalorder %s14, 0
    %p165 = por %p163, %p164
    %p166 = scmp.ne.s32.totalorder %s158, %s160
    %p167 = scmp.eq.s32.totalorder %s19, 1
    %p168 = por %p166, %p167
    %p169 = scmp.ne.s32.totalorder %s160, %s161
    %p170 = scmp.eq.s32.totalorder %s19, 0
    %p171 = por %p169, %p170
    %p172 = scmp.ne.s32.totalorder %s160, %s161
    %p173 = scmp.eq.s32.totalorder %s20, 1
    %p174 = por %p172, %p173
    %p176 = scmp.ne.s32.totalorder %s161, %s175
    %p177 = scmp.eq.s32.totalorder %s20, 0
    %p178 = por %p176, %p177
    %s180 = sadd.s32 %s179, 1
    %p183 = scmp.eq.s32.totalorder %s14, 1
    %p184 = scmp.ne.s32.totalorder %s179, %s181
    %p185 = scmp.eq.s32.totalorder %s14, 0
    %p186 = por %p184, %p185
    %p187 = scmp.ne.s32.totalorder %s179, %s181
    %p188 = scmp.eq.s32.totalorder %s19, 1
    %p189 = por %p187, %p188
    %p190 = scmp.ne.s32.totalorder %s181, %s182
    %p191 = scmp.eq.s32.totalorder %s19, 0
    %p192 = por %p190, %p191
    %p193 = scmp.ne.s32.totalorder %s181, %s182
    %p194 = scmp.eq.s32.totalorder %s20, 1
    %p195 = por %p193, %p194
    %p197 = scmp.ne.s32.totalorder %s182, %s196
    %p198 = scmp.eq.s32.totalorder %s20, 0
    %p199 = por %p197, %p198
    %s200 = ssub.s32 %s14, %s21
    %p201 = scmp.eq.s32.totalorder %s200, 0
    %s203 = sadd.s32 %s202, 1
    %s204 = scalar_select %p201, %s202, %s203
    %p207 = pneg %p201
    %p208 = scmp.eq.s32.totalorder %s14, 1
    %p209 = por %p207, %p208
    %p210 = scmp.ne.s32.totalorder %s202, %s205
    %p211 = scmp.eq.s32.totalorder %s14, 0
    %p212 = por %p210, %p211
    %p213 = scmp.ne.s32.totalorder %s202, %s205
    %p214 = scmp.eq.s32.totalorder %s19, 1
    %p215 = por %p213, %p214
    %p216 = scmp.ne.s32.totalorder %s205, %s206
    %p217 = scmp.eq.s32.totalorder %s19, 0
    %p218 = por %p216, %p217
    %p219 = scmp.ne.s32.totalorder %s205, %s206
    %p220 = scmp.eq.s32.totalorder %s20, 1
    %p221 = por %p219, %p220
    %p223 = scmp.ne.s32.totalorder %s206, %s222
    %p224 = scmp.eq.s32.totalorder %s20, 0
    %p225 = por %p223, %p224
    %p226 = scmp.le.s32.totalorder 1, %s14
    %p227 = scmp.lt.s32.totalorder %s14, 3
    %p228 = pnand %p226, %p227
    %p229 = pneg %p228
    // Predicated region
    $region9: #{tpu_custom_call.1} parent=5 // pred_check
      _
    $region10: #{tpu_custom_call.1} parent=5 // pred_check_branch
      %231 = sbr.rel (%p228) target = $region12
    $region11: #{tpu_custom_call.1} parent=5 // pred_region
      %s232 = ssub.s32 %s14, 1
      // Predicated region
      $region13: #{tpu_custom_call.1} parent=11 // pred_check
        %p233 = pneg %p87
      $region14: #{tpu_custom_call.1} parent=11 // pred_check_branch
        %235 = sbr.rel (%p233) target = $region16
      $region15: #{tpu_custom_call.1} parent=11 // pred_region
        _
      $region16: #{tpu_custom_call.1} parent=11 // pred_fallthru
        _
      // Predicated region
      $region17: #{tpu_custom_call.1} parent=11 // pred_check
        %p236 = pneg %p108
      $region18: #{tpu_custom_call.1} parent=11 // pred_check_branch
        %238 = sbr.rel (%p236) target = $region20
      $region19: #{tpu_custom_call.1} parent=11 // pred_region
        _
      $region20: #{tpu_custom_call.1} parent=11 // pred_fallthru
        _
      // Predicated region
      $region21: #{tpu_custom_call.1} parent=11 // pred_check
        %p239 = pneg %p129
      $region22: #{tpu_custom_call.1} parent=11 // pred_check_branch
        %241 = sbr.rel (%p239) target = $region24
      $region23: #{tpu_custom_call.1} parent=11 // pred_region
        _
      $region24: #{tpu_custom_call.1} parent=11 // pred_fallthru
        _
      // Predicated region
      $region25: #{tpu_custom_call.1} parent=11 // pred_check
        %p242 = pneg %p150
      $region26: #{tpu_custom_call.1} parent=11 // pred_check_branch
        %244 = sbr.rel (%p242) target = $region28
      $region27: #{tpu_custom_call.1} parent=11 // pred_region
        _
      $region28: #{tpu_custom_call.1} parent=11 // pred_fallthru
        _
      // Predicated region
      $region29: #{tpu_custom_call.1} parent=11 // pred_check
        %p245 = pneg %p171
      $region30: #{tpu_custom_call.1} parent=11 // pred_check_branch
        %247 = sbr.rel (%p245) target = $region32
      $region31: #{tpu_custom_call.1} parent=11 // pred_region
        _
      $region32: #{tpu_custom_call.1} parent=11 // pred_fallthru
        _
      // Predicated region
      $region33: #{tpu_custom_call.1} parent=11 // pred_check
        %p248 = pneg %p192
      $region34: #{tpu_custom_call.1} parent=11 // pred_check_branch
        %250 = sbr.rel (%p248) target = $region36
      $region35: #{tpu_custom_call.1} parent=11 // pred_region
        _
      $region36: #{tpu_custom_call.1} parent=11 // pred_fallthru
        _
    $region12: #{tpu_custom_call.1} parent=5 // pred_fallthru
      _
    %p251 = scmp.lt.s32.totalorder %s14, 2
    // Predicated region
    $region37: #{tpu_custom_call.1} parent=5 // pred_check
      %p252 = pneg %p251
    $region38: #{tpu_custom_call.1} parent=5 // pred_check_branch
      %254 = sbr.rel (%p252) target = $region40
    $region39: #{tpu_custom_call.1} parent=5 // pred_region
      // Predicated region
      $region41: #{tpu_custom_call.1} parent=39 // pred_check
        %p255 = pneg %p34
      $region42: #{tpu_custom_call.1} parent=39 // pred_check_branch
        %257 = sbr.rel (%p255) target = $region44
      $region43: #{tpu_custom_call.1} parent=39 // pred_region
        %s258 = smul.u32 16, %s14
        %p259 = scmp.lt.s32.totalorder %s258, 31
        %s260 = scalar_select %p259, %s258, 31
        %s261 = smul.addr %s260, 8
        %s262 = scalar_lea.vmem %s0, %s261
        %s263 = smul.u32 16, %s14
      $region44: #{tpu_custom_call.1} parent=39 // pred_fallthru
        _
      // Predicated region
      $region45: #{tpu_custom_call.1} parent=39 // pred_check
        %p264 = pneg %p60
      $region46: #{tpu_custom_call.1} parent=39 // pred_check_branch
        %266 = sbr.rel (%p264) target = $region48
      $region47: #{tpu_custom_call.1} parent=39 // pred_region
        %s267 = smul.u32 16, %s14
        %p268 = scmp.lt.s32.totalorder %s267, 31
        %s269 = scalar_select %p268, %s267, 31
        %s270 = smul.addr %s269, 8
        %s271 = scalar_lea.vmem %s1, %s270
        %s272 = smul.u32 16, %s14
      $region48: #{tpu_custom_call.1} parent=39 // pred_fallthru
        _
    $region40: #{tpu_custom_call.1} parent=5 // pred_fallthru
      _
    %p273 = scmp.le.s32.totalorder 1, %s14
    %p274 = scmp.lt.s32.totalorder %s14, 3
    %p275 = pnand %p273, %p274
    %p276 = pneg %p275
    // Predicated region
    $region49: #{tpu_custom_call.1} parent=5 // pred_check
      _
    $region50: #{tpu_custom_call.1} parent=5 // pred_check_branch
      %278 = sbr.rel (%p275) target = $region52
    $region51: #{tpu_custom_call.1} parent=5 // pred_region
      %s279 = ssub.s32 %s14, 1
      %s280 = smul.u32 16, %s19
      %p281 = scmp.lt.s32.totalorder %s280, 31
      %s282 = scalar_select %p281, %s280, 31
      %s283 = smul.addr %s282, 8
      %s284 = scalar_lea.vmem %s0, %s283
      %p285 = pneg %p40
      %p286 = pneg %p37
      %s287 = smul.u32 16, %s19
      %p288 = scmp.lt.s32.totalorder %s287, 31
      %s289 = scalar_select %p288, %s287, 31
      %s290 = smul.addr %s289, 8
      %s291 = scalar_lea.vmem %s1, %s290
      %p292 = pneg %p66
      %p293 = pneg %p63
      %p294 = pneg %p87
      %p295 = pneg %p84
      %p296 = pneg %p108
      %p297 = pneg %p105
      %p298 = pneg %p129
      %p299 = pneg %p126
      %p300 = pneg %p150
      %p301 = pneg %p147
      %p302 = pneg %p171
      %p303 = pneg %p168
      %p304 = pneg %p192
      %p305 = pneg %p189
      %p306 = pneg %p218
      %p307 = pneg %p215
      %s308 = smul.u32 16, %s19
      %p309 = scmp.lt.s32.totalorder %s308, 31
      %s310 = scalar_select %p309, %s308, 31
      %s311 = smul.addr %s310, 8
      %s312 = scalar_lea.vmem %s8, %s311
      %s313 = smul.u32 16, %s19
      %p314 = scmp.lt.s32.totalorder %s313, 31
      %s315 = scalar_select %p314, %s313, 31
      %s316 = smul.addr %s315, 8
      %s317 = scalar_lea.vmem %s0, %s316
      %s318 = smul.u32 16, %s19
      %s319 = smul.u32 16, %s19
      %p320 = scmp.lt.s32.totalorder %s319, 31
      %s321 = scalar_select %p320, %s319, 31
      %s322 = smul.addr %s321, 8
      %s323 = scalar_lea.vmem %s1, %s322
      %s324 = smul.u32 16, %s19
      %s325 = smul.u32 16, %s19
      %p326 = scmp.lt.s32.totalorder %s325, 31
      %s327 = scalar_select %p326, %s325, 31
      %s328 = smul.addr %s327, 8
      %s329 = scalar_lea.vmem %s8, %s328
      %s330 = smul.u32 16, %s19
      %v332 = vld [vmem:[%s317] sm:$0xff]
      %v333 = vld [vmem:[%s317 + $0x8] sm:$0xff]
      %v334 = vld [vmem:[%s317 + $0x10] sm:$0xff]
      %v335 = vld [vmem:[%s317 + $0x18] sm:$0xff]
      %v336 = vld [vmem:[%s317 + $0x20] sm:$0xff]
      %v337 = vld [vmem:[%s317 + $0x28] sm:$0xff]
      %v338 = vld [vmem:[%s317 + $0x30] sm:$0xff]
      %v339 = vld [vmem:[%s317 + $0x38] sm:$0xff]
      %v340 = vld [vmem:[%s317 + $0x40] sm:$0xff]
      %v341 = vld [vmem:[%s317 + $0x48] sm:$0xff]
      %v342 = vld [vmem:[%s317 + $0x50] sm:$0xff]
      %v343 = vld [vmem:[%s317 + $0x58] sm:$0xff]
      %v344 = vld [vmem:[%s317 + $0x60] sm:$0xff]
      %v345 = vld [vmem:[%s317 + $0x68] sm:$0xff]
      %v346 = vld [vmem:[%s317 + $0x70] sm:$0xff]
      %v347 = vld [vmem:[%s317 + $0x78] sm:$0xff]
      %v348 = vld [vmem:[%s2] sm:$0x1]
      %v349 = vld [vmem:[%s2 + $0x1] sm:$0x1]
      %v350 = vld [vmem:[%s3] sm:$0x1]
      %v351 = vld [vmem:[%s3 + $0x1] sm:$0x1]
      %v352 = vld [vmem:[%s3 + $0x2] sm:$0x1]
      %v353 = vld [vmem:[%s3 + $0x3] sm:$0x1]
      %vm354 = vcmask 261120
      %v355 = vsel %vm354, %v332, 0.0
      %356 = vadd.xlane.f32.xlu0 %v355
      %v357 = vpop.xlane.xlu0 %356
      %v358 = vsel %vm354, %v333, 0.0
      %359 = vadd.xlane.f32.xlu0 %v358
      %v360 = vpop.xlane.xlu0 %359
      %v361 = vsel %vm354, %v334, 0.0
      %362 = vadd.xlane.f32.xlu0 %v361
      %v363 = vpop.xlane.xlu0 %362
      %v364 = vsel %vm354, %v335, 0.0
      %365 = vadd.xlane.f32.xlu0 %v364
      %v366 = vpop.xlane.xlu0 %365
      %v367 = vsel %vm354, %v336, 0.0
      %368 = vadd.xlane.f32.xlu0 %v367
      %v369 = vpop.xlane.xlu0 %368
      %v370 = vsel %vm354, %v337, 0.0
      %371 = vadd.xlane.f32.xlu0 %v370
      %v372 = vpop.xlane.xlu0 %371
      %v373 = vsel %vm354, %v338, 0.0
      %374 = vadd.xlane.f32.xlu0 %v373
      %v375 = vpop.xlane.xlu0 %374
      %v376 = vsel %vm354, %v339, 0.0
      %377 = vadd.xlane.f32.xlu0 %v376
      %v378 = vpop.xlane.xlu0 %377
      %v379 = vsel %vm354, %v340, 0.0
      %380 = vadd.xlane.f32.xlu0 %v379
      %v381 = vpop.xlane.xlu0 %380
      %v382 = vsel %vm354, %v341, 0.0
      %383 = vadd.xlane.f32.xlu0 %v382
      %v384 = vpop.xlane.xlu0 %383
      %v385 = vsel %vm354, %v342, 0.0
      %386 = vadd.xlane.f32.xlu0 %v385
      %v387 = vpop.xlane.xlu0 %386
      %v388 = vsel %vm354, %v343, 0.0
      %389 = vadd.xlane.f32.xlu0 %v388
      %v390 = vpop.xlane.xlu0 %389
      %v391 = vsel %vm354, %v344, 0.0
      %392 = vadd.xlane.f32.xlu0 %v391
      %v393 = vpop.xlane.xlu0 %392
      %v394 = vsel %vm354, %v345, 0.0
      %395 = vadd.xlane.f32.xlu0 %v394
      %v396 = vpop.xlane.xlu0 %395
      %v397 = vsel %vm354, %v346, 0.0
      %398 = vadd.xlane.f32.xlu0 %v397
      %v399 = vpop.xlane.xlu0 %398
      %v400 = vsel %vm354, %v347, 0.0
      %401 = vadd.xlane.f32.xlu0 %v400
      %v402 = vpop.xlane.xlu0 %401
      %v403 = vrcp.pop 32.0
      %v404 = vmul.f32 %v357, %v403
      %v405 = vmul.f32 %v360, %v403
      %v406 = vmul.f32 %v363, %v403
      %v407 = vmul.f32 %v366, %v403
      %v408 = vmul.f32 %v369, %v403
      %v409 = vmul.f32 %v372, %v403
      %v410 = vmul.f32 %v375, %v403
      %v411 = vmul.f32 %v378, %v403
      %v412 = vmul.f32 %v381, %v403
      %v413 = vmul.f32 %v384, %v403
      %v414 = vmul.f32 %v387, %v403
      %v415 = vmul.f32 %v390, %v403
      %v416 = vmul.f32 %v393, %v403
      %v417 = vmul.f32 %v396, %v403
      %v418 = vmul.f32 %v399, %v403
      %v419 = vmul.f32 %v402, %v403
      %v420 = vsub.f32 %v332, %v404
      %v421 = vsub.f32 %v333, %v405
      %v422 = vsub.f32 %v334, %v406
      %v423 = vsub.f32 %v335, %v407
      %v424 = vsub.f32 %v336, %v408
      %v425 = vsub.f32 %v337, %v409
      %v426 = vsub.f32 %v338, %v410
      %v427 = vsub.f32 %v339, %v411
      %v428 = vsub.f32 %v340, %v412
      %v429 = vsub.f32 %v341, %v413
      %v430 = vsub.f32 %v342, %v414
      %v431 = vsub.f32 %v343, %v415
      %v432 = vsub.f32 %v344, %v416
      %v433 = vsub.f32 %v345, %v417
      %v434 = vsub.f32 %v346, %v418
      %v435 = vsub.f32 %v347, %v419
      %v436 = vmul.f32 %v420, %v420
      %v437 = vmul.f32 %v421, %v421
      %v438 = vmul.f32 %v422, %v422
      %v439 = vmul.f32 %v423, %v423
      %v440 = vmul.f32 %v424, %v424
      %v441 = vmul.f32 %v425, %v425
      %v442 = vmul.f32 %v426, %v426
      %v443 = vmul.f32 %v427, %v427
      %v444 = vmul.f32 %v428, %v428
      %v445 = vmul.f32 %v429, %v429
      %v446 = vmul.f32 %v430, %v430
      %v447 = vmul.f32 %v431, %v431
      %v448 = vmul.f32 %v432, %v432
      %v449 = vmul.f32 %v433, %v433
      %v450 = vmul.f32 %v434, %v434
      %v451 = vmul.f32 %v435, %v435
      %v452 = vsel %vm354, %v436, 0.0
      %453 = vadd.xlane.f32.xlu0 %v452
      %v454 = vpop.xlane.xlu0 %453
      %v455 = vsel %vm354, %v437, 0.0
      %456 = vadd.xlane.f32.xlu0 %v455
      %v457 = vpop.xlane.xlu0 %456
      %v458 = vsel %vm354, %v438, 0.0
      %459 = vadd.xlane.f32.xlu0 %v458
      %v460 = vpop.xlane.xlu0 %459
      %v461 = vsel %vm354, %v439, 0.0
      %462 = vadd.xlane.f32.xlu0 %v461
      %v463 = vpop.xlane.xlu0 %462
      %v464 = vsel %vm354, %v440, 0.0
      %465 = vadd.xlane.f32.xlu0 %v464
      %v466 = vpop.xlane.xlu0 %465
      %v467 = vsel %vm354, %v441, 0.0
      %468 = vadd.xlane.f32.xlu0 %v467
      %v469 = vpop.xlane.xlu0 %468
      %v470 = vsel %vm354, %v442, 0.0
      %471 = vadd.xlane.f32.xlu0 %v470
      %v472 = vpop.xlane.xlu0 %471
      %v473 = vsel %vm354, %v443, 0.0
      %474 = vadd.xlane.f32.xlu0 %v473
      %v475 = vpop.xlane.xlu0 %474
      %v476 = vsel %vm354, %v444, 0.0
      %477 = vadd.xlane.f32.xlu0 %v476
      %v478 = vpop.xlane.xlu0 %477
      %v479 = vsel %vm354, %v445, 0.0
      %480 = vadd.xlane.f32.xlu0 %v479
      %v481 = vpop.xlane.xlu0 %480
      %v482 = vsel %vm354, %v446, 0.0
      %483 = vadd.xlane.f32.xlu0 %v482
      %v484 = vpop.xlane.xlu0 %483
      %v485 = vsel %vm354, %v447, 0.0
      %486 = vadd.xlane.f32.xlu0 %v485
      %v487 = vpop.xlane.xlu0 %486
      %v488 = vsel %vm354, %v448, 0.0
      %489 = vadd.xlane.f32.xlu0 %v488
      %v490 = vpop.xlane.xlu0 %489
      %v491 = vsel %vm354, %v449, 0.0
      %492 = vadd.xlane.f32.xlu0 %v491
      %v493 = vpop.xlane.xlu0 %492
      %v494 = vsel %vm354, %v450, 0.0
      %495 = vadd.xlane.f32.xlu0 %v494
      %v496 = vpop.xlane.xlu0 %495
      %v497 = vsel %vm354, %v451, 0.0
      %498 = vadd.xlane.f32.xlu0 %v497
      %v499 = vpop.xlane.xlu0 %498
      %v500 = vmul.f32 %v454, %v403
      %v501 = vmul.f32 %v457, %v403
      %v502 = vmul.f32 %v460, %v403
      %v503 = vmul.f32 %v463, %v403
      %v504 = vmul.f32 %v466, %v403
      %v505 = vmul.f32 %v469, %v403
      %v506 = vmul.f32 %v472, %v403
      %v507 = vmul.f32 %v475, %v403
      %v508 = vmul.f32 %v478, %v403
      %v509 = vmul.f32 %v481, %v403
      %v510 = vmul.f32 %v484, %v403
      %v511 = vmul.f32 %v487, %v403
      %v512 = vmul.f32 %v490, %v403
      %v513 = vmul.f32 %v493, %v403
      %v514 = vmul.f32 %v496, %v403
      %v515 = vmul.f32 %v499, %v403
      %v516 = vadd.f32 %v500, 1e-05
      %v517 = vadd.f32 %v501, 1e-05
      %v518 = vadd.f32 %v502, 1e-05
      %v519 = vadd.f32 %v503, 1e-05
      %v520 = vadd.f32 %v504, 1e-05
      %v521 = vadd.f32 %v505, 1e-05
      %v522 = vadd.f32 %v506, 1e-05
      %v523 = vadd.f32 %v507, 1e-05
      %v524 = vadd.f32 %v508, 1e-05
      %v525 = vadd.f32 %v509, 1e-05
      %v526 = vadd.f32 %v510, 1e-05
      %v527 = vadd.f32 %v511, 1e-05
      %v528 = vadd.f32 %v512, 1e-05
      %v529 = vadd.f32 %v513, 1e-05
      %v530 = vadd.f32 %v514, 1e-05
      %v531 = vadd.f32 %v515, 1e-05
      %v532 = vrsqrt.pop %v516
      %v533 = vrsqrt.pop %v517
      %v534 = vrsqrt.pop %v518
      %v535 = vrsqrt.pop %v519
      %v536 = vrsqrt.pop %v520
      %v537 = vrsqrt.pop %v521
      %v538 = vrsqrt.pop %v522
      %v539 = vrsqrt.pop %v523
      %v540 = vrsqrt.pop %v524
      %v541 = vrsqrt.pop %v525
      %v542 = vrsqrt.pop %v526
      %v543 = vrsqrt.pop %v527
      %v544 = vrsqrt.pop %v528
      %v545 = vrsqrt.pop %v529
      %v546 = vrsqrt.pop %v530
      %v547 = vrsqrt.pop %v531
      %v548 = vmul.f32 %v420, %v532
      %v549 = vmul.f32 %v421, %v533
      %v550 = vmul.f32 %v422, %v534
      %v551 = vmul.f32 %v423, %v535
      %v552 = vmul.f32 %v424, %v536
      %v553 = vmul.f32 %v425, %v537
      %v554 = vmul.f32 %v426, %v538
      %v555 = vmul.f32 %v427, %v539
      %v556 = vmul.f32 %v428, %v540
      %v557 = vmul.f32 %v429, %v541
      %v558 = vmul.f32 %v430, %v542
      %v559 = vmul.f32 %v431, %v543
      %v560 = vmul.f32 %v432, %v544
      %v561 = vmul.f32 %v433, %v545
      %v562 = vmul.f32 %v434, %v546
      %v563 = vmul.f32 %v435, %v547
      %v564 = vlaneseq
      %v565 = vshrl.u32 %v564, 7
      %v566 = vsub.s32 0, %v565
      %v567 = vrot.slane %v348, %v566
      %v568 = vmul.f32 %v548, %v567
      %v569 = vmul.f32 %v549, %v567
      %v570 = vmul.f32 %v550, %v567
      %v571 = vmul.f32 %v551, %v567
      %v572 = vmul.f32 %v552, %v567
      %v573 = vmul.f32 %v553, %v567
      %v574 = vmul.f32 %v554, %v567
      %v575 = vmul.f32 %v555, %v567
      %v576 = vmul.f32 %v556, %v567
      %v577 = vmul.f32 %v557, %v567
      %v578 = vmul.f32 %v558, %v567
      %v579 = vmul.f32 %v559, %v567
      %v580 = vmul.f32 %v560, %v567
      %v581 = vmul.f32 %v561, %v567
      %v582 = vmul.f32 %v562, %v567
      %v583 = vmul.f32 %v563, %v567
      %v584 = vlaneseq
      %v585 = vshrl.u32 %v584, 7
      %v586 = vsub.s32 0, %v585
      %v587 = vrot.slane %v349, %v586
      %v588 = vadd.f32 %v568, %v587
      %v589 = vadd.f32 %v569, %v587
      %v590 = vadd.f32 %v570, %v587
      %v591 = vadd.f32 %v571, %v587
      %v592 = vadd.f32 %v572, %v587
      %v593 = vadd.f32 %v573, %v587
      %v594 = vadd.f32 %v574, %v587
      %v595 = vadd.f32 %v575, %v587
      %v596 = vadd.f32 %v576, %v587
      %v597 = vadd.f32 %v577, %v587
      %v598 = vadd.f32 %v578, %v587
      %v599 = vadd.f32 %v579, %v587
      %v600 = vadd.f32 %v580, %v587
      %v601 = vadd.f32 %v581, %v587
      %v602 = vadd.f32 %v582, %v587
      %v603 = vadd.f32 %v583, %v587
      %v604 = vxor.u32 %v588, 2147483648
      %v605 = vxor.u32 %v589, 2147483648
      %v606 = vxor.u32 %v590, 2147483648
      %v607 = vxor.u32 %v591, 2147483648
      %v608 = vxor.u32 %v592, 2147483648
      %v609 = vxor.u32 %v593, 2147483648
      %v610 = vxor.u32 %v594, 2147483648
      %v611 = vxor.u32 %v595, 2147483648
      %v612 = vxor.u32 %v596, 2147483648
      %v613 = vxor.u32 %v597, 2147483648
      %v614 = vxor.u32 %v598, 2147483648
      %v615 = vxor.u32 %v599, 2147483648
      %v616 = vxor.u32 %v600, 2147483648
      %v617 = vxor.u32 %v601, 2147483648
      %v618 = vxor.u32 %v602, 2147483648
      %v619 = vxor.u32 %v603, 2147483648
      %v620 = vmul.f32 %v604, 1.442695
      %v621 = vpow.pop %v620
      %v622 = vmul.f32 %v605, 1.442695
      %v623 = vpow.pop %v622
      %v624 = vmul.f32 %v606, 1.442695
      %v625 = vpow.pop %v624
      %v626 = vmul.f32 %v607, 1.442695
      %v627 = vpow.pop %v626
      %v628 = vmul.f32 %v608, 1.442695
      %v629 = vpow.pop %v628
      %v630 = vmul.f32 %v609, 1.442695
      %v631 = vpow.pop %v630
      %v632 = vmul.f32 %v610, 1.442695
      %v633 = vpow.pop %v632
      %v634 = vmul.f32 %v611, 1.442695
      %v635 = vpow.pop %v634
      %v636 = vmul.f32 %v612, 1.442695
      %v637 = vpow.pop %v636
      %v638 = vmul.f32 %v613, 1.442695
      %v639 = vpow.pop %v638
      %v640 = vmul.f32 %v614, 1.442695
      %v641 = vpow.pop %v640
      %v642 = vmul.f32 %v615, 1.442695
      %v643 = vpow.pop %v642
      %v644 = vmul.f32 %v616, 1.442695
      %v645 = vpow.pop %v644
      %v646 = vmul.f32 %v617, 1.442695
      %v647 = vpow.pop %v646
      %v648 = vmul.f32 %v618, 1.442695
      %v649 = vpow.pop %v648
      %v650 = vmul.f32 %v619, 1.442695
      %v651 = vpow.pop %v650
      %v652 = vadd.f32 %v621, 1.0
      %v653 = vadd.f32 %v623, 1.0
      %v654 = vadd.f32 %v625, 1.0
      %v655 = vadd.f32 %v627, 1.0
      %v656 = vadd.f32 %v629, 1.0
      %v657 = vadd.f32 %v631, 1.0
      %v658 = vadd.f32 %v633, 1.0
      %v659 = vadd.f32 %v635, 1.0
      %v660 = vadd.f32 %v637, 1.0
      %v661 = vadd.f32 %v639, 1.0
      %v662 = vadd.f32 %v641, 1.0
      %v663 = vadd.f32 %v643, 1.0
      %v664 = vadd.f32 %v645, 1.0
      %v665 = vadd.f32 %v647, 1.0
      %v666 = vadd.f32 %v649, 1.0
      %v667 = vadd.f32 %v651, 1.0
      %v668 = vrcp.pop %v652
      %v669 = vmul.f32 1.0, %v668
      %v670 = vrcp.pop %v653
      %v671 = vmul.f32 1.0, %v670
      %v672 = vrcp.pop %v654
      %v673 = vmul.f32 1.0, %v672
      %v674 = vrcp.pop %v655
      %v675 = vmul.f32 1.0, %v674
      %v676 = vrcp.pop %v656
      %v677 = vmul.f32 1.0, %v676
      %v678 = vrcp.pop %v657
      %v679 = vmul.f32 1.0, %v678
      %v680 = vrcp.pop %v658
      %v681 = vmul.f32 1.0, %v680
      %v682 = vrcp.pop %v659
      %v683 = vmul.f32 1.0, %v682
      %v684 = vrcp.pop %v660
      %v685 = vmul.f32 1.0, %v684
      %v686 = vrcp.pop %v661
      %v687 = vmul.f32 1.0, %v686
      %v688 = vrcp.pop %v662
      %v689 = vmul.f32 1.0, %v688
      %v690 = vrcp.pop %v663
      %v691 = vmul.f32 1.0, %v690
      %v692 = vrcp.pop %v664
      %v693 = vmul.f32 1.0, %v692
      %v694 = vrcp.pop %v665
      %v695 = vmul.f32 1.0, %v694
      %v696 = vrcp.pop %v666
      %v697 = vmul.f32 1.0, %v696
      %v698 = vrcp.pop %v667
      %v699 = vmul.f32 1.0, %v698
      %v700 = vmul.f32 %v588, %v669
      %v701 = vmul.f32 %v589, %v671
      %v702 = vmul.f32 %v590, %v673
      %v703 = vmul.f32 %v591, %v675
      %v704 = vmul.f32 %v592, %v677
      %v705 = vmul.f32 %v593, %v679
      %v706 = vmul.f32 %v594, %v681
      %v707 = vmul.f32 %v595, %v683
      %v708 = vmul.f32 %v596, %v685
      %v709 = vmul.f32 %v597, %v687
      %v710 = vmul.f32 %v598, %v689
      %v711 = vmul.f32 %v599, %v691
      %v712 = vmul.f32 %v600, %v693
      %v713 = vmul.f32 %v601, %v695
      %v714 = vmul.f32 %v602, %v697
      %v715 = vmul.f32 %v603, %v699
      %v716 = vpack.c.bf16 %v701, %v700
      %v717 = vpack.c.bf16 %v703, %v702
      %v718 = vpack.c.bf16 %v705, %v704
      %v719 = vpack.c.bf16 %v707, %v706
      %v720 = vpack.c.bf16 %v709, %v708
      %v721 = vpack.c.bf16 %v711, %v710
      %v722 = vpack.c.bf16 %v713, %v712
      %v723 = vpack.c.bf16 %v715, %v714
      %v724 = vld [vmem:[%s4] sm:$0xf]
      %v725 = vld [vmem:[%s4 + $0x4] sm:$0xf]
      %v726 = vld [vmem:[%s4 + $0x8] sm:$0xf]
      %v727 = vld [vmem:[%s4 + $0xc] sm:$0xf]
      %v728 = vld [vmem:[%s323] sm:$0xff]
      %v729 = vld [vmem:[%s323 + $0x8] sm:$0xff]
      %v730 = vld [vmem:[%s323 + $0x10] sm:$0xff]
      %v731 = vld [vmem:[%s323 + $0x18] sm:$0xff]
      %v732 = vld [vmem:[%s323 + $0x20] sm:$0xff]
      %v733 = vld [vmem:[%s323 + $0x28] sm:$0xff]
      %v734 = vld [vmem:[%s323 + $0x30] sm:$0xff]
      %v735 = vld [vmem:[%s323 + $0x38] sm:$0xff]
      %v736 = vld [vmem:[%s323 + $0x40] sm:$0xff]
      %v737 = vld [vmem:[%s323 + $0x48] sm:$0xff]
      %v738 = vld [vmem:[%s323 + $0x50] sm:$0xff]
      %v739 = vld [vmem:[%s323 + $0x58] sm:$0xff]
      %v740 = vld [vmem:[%s323 + $0x60] sm:$0xff]
      %v741 = vld [vmem:[%s323 + $0x68] sm:$0xff]
      %v742 = vld [vmem:[%s323 + $0x70] sm:$0xff]
      %v743 = vld [vmem:[%s323 + $0x78] sm:$0xff]
      %v744 = vpack.c.bf16 %v729, %v728
      %v745 = vpack.c.bf16 %v731, %v730
      %v746 = vpack.c.bf16 %v733, %v732
      %v747 = vpack.c.bf16 %v735, %v734
      %v748 = vpack.c.bf16 %v737, %v736
      %v749 = vpack.c.bf16 %v739, %v738
      %v750 = vpack.c.bf16 %v741, %v740
      %v751 = vpack.c.bf16 %v743, %v742
      %v752 = vld [vmem:[%s5] sm:$0xf]
      %v753 = vld [vmem:[%s5 + $0x4] sm:$0xf]
      %v756 = vunpack.c.l.b16 %v752
      %v757 = vunpack.c.l.b16 %v753
      %v758 = vpack.c.b16 %v757, %v756
      %vm760 = vcmask 130048
      %v762 = vsel %vm760, %v744, 0
      %v765 = vsel %vm760, %v745, 0
      %v768 = vsel %vm760, %v746, 0
      %v771 = vsel %vm760, %v747, 0
      %v774 = vsel %vm760, %v748, 0
      %v777 = vsel %vm760, %v749, 0
      %v780 = vsel %vm760, %v750, 0
      %v783 = vsel %vm760, %v751, 0
      %785 = vmatprep.subr.bf16.mxu0 0
      %786 = vmatpush1.bf16.msra.mxu0 %v758
      %787 = vmatprep.subr.bf16.mxu0 0
      %788 = vmatpush1.bf16.msra.mxu0 0
      %789 = vmatprep.subr.bf16.mxu0 0
      %790 = vmatpush1.bf16.msra.mxu0 0
      %791 = vmatprep.subr.bf16.mxu0 0
      %792 = vmatpush1.bf16.msra.mxu0 0
      %793 = vmatprep.subr.bf16.mxu0 0
      %794 = vmatpush1.bf16.msra.mxu0 0
      %795 = vmatprep.subr.bf16.mxu0 0
      %796 = vmatpush1.bf16.msra.mxu0 0
      %797 = vmatprep.subr.bf16.mxu0 0
      %798 = vmatpush1.bf16.msra.mxu0 0
      %799 = vmatprep.subr.bf16.mxu0 0
      %800 = vmatpush1.bf16.msra.mxu0 0
      %801 = vmatprep.subr.bf16.mxu0 0
      %802 = vmatpush1.bf16.msra.mxu0 0
      %803 = vmatprep.subr.bf16.mxu0 0
      %804 = vmatpush1.bf16.msra.mxu0 0
      %805 = vmatprep.subr.bf16.mxu0 0
      %806 = vmatpush1.bf16.msra.mxu0 0
      %807 = vmatprep.subr.bf16.mxu0 0
      %808 = vmatpush1.bf16.msra.mxu0 0
      %809 = vmatprep.subr.bf16.mxu0 0
      %810 = vmatpush1.bf16.msra.mxu0 0
      %811 = vmatprep.subr.bf16.mxu0 0
      %812 = vmatpush1.bf16.msra.mxu0 0
      %813 = vmatprep.subr.bf16.mxu0 0
      %814 = vmatpush1.bf16.msra.mxu0 0
      %815 = vmatprep.subr.bf16.mxu0 0
      %816 = vmatpush1.bf16.msra.mxu0 0
      %817 = vmatprep.mubr.bf16.mxu0 0
      %818 = vmatmul.mubr.bf16.gmra.mrb[0].mxu0 %v762
      %v819 = vpop.f32.mrb[0].mxu0
      %v820 = vadd.f32 0.0, %v819
      %v821 = vpop.f32.mrb[0].mxu0
      %v822 = vpop.f32.mrb[0].mxu0
      %v823 = vadd.f32 0.0, %v822
      %v824 = vpop.f32.mrb[0].mxu0
      %825 = vmatprep.mubr.bf16.mxu0 0
      %826 = vmatmul.mubr.bf16.gmra.mrb[0].mxu0 %v765
      %v827 = vpop.f32.mrb[0].mxu0
      %v828 = vadd.f32 0.0, %v827
      %v829 = vpop.f32.mrb[0].mxu0
      %v830 = vpop.f32.mrb[0].mxu0
      %v831 = vadd.f32 0.0, %v830
      %v832 = vpop.f32.mrb[0].mxu0
      %833 = vmatprep.mubr.bf16.mxu0 0
      %834 = vmatmul.mubr.bf16.gmra.mrb[0].mxu0 %v768
      %v835 = vpop.f32.mrb[0].mxu0
      %v836 = vadd.f32 0.0, %v835
      %v837 = vpop.f32.mrb[0].mxu0
      %v838 = vpop.f32.mrb[0].mxu0
      %v839 = vadd.f32 0.0, %v838
      %v840 = vpop.f32.mrb[0].mxu0
      %841 = vmatprep.mubr.bf16.mxu0 0
      %842 = vmatmul.mubr.bf16.gmra.mrb[0].mxu0 %v771
      %v843 = vpop.f32.mrb[0].mxu0
      %v844 = vadd.f32 0.0, %v843
      %v845 = vpop.f32.mrb[0].mxu0
      %v846 = vpop.f32.mrb[0].mxu0
      %v847 = vadd.f32 0.0, %v846
      %v848 = vpop.f32.mrb[0].mxu0
      %849 = vmatprep.mubr.bf16.mxu0 0
      %850 = vmatmul.mubr.bf16.gmra.mrb[0].mxu0 %v774
      %v851 = vpop.f32.mrb[0].mxu0
      %v852 = vadd.f32 0.0, %v851
      %v853 = vpop.f32.mrb[0].mxu0
      %v854 = vpop.f32.mrb[0].mxu0
      %v855 = vadd.f32 0.0, %v854
      %v856 = vpop.f32.mrb[0].mxu0
      %857 = vmatprep.mubr.bf16.mxu0 0
      %858 = vmatmul.mubr.bf16.gmra.mrb[0].mxu0 %v777
      %v859 = vpop.f32.mrb[0].mxu0
      %v860 = vadd.f32 0.0, %v859
      %v861 = vpop.f32.mrb[0].mxu0
      %v862 = vpop.f32.mrb[0].mxu0
      %v863 = vadd.f32 0.0, %v862
      %v864 = vpop.f32.mrb[0].mxu0
      %865 = vmatprep.mubr.bf16.mxu0 0
      %866 = vmatmul.mubr.bf16.gmra.mrb[0].mxu0 %v780
      %v867 = vpop.f32.mrb[0].mxu0
      %v868 = vadd.f32 0.0, %v867
      %v869 = vpop.f32.mrb[0].mxu0
      %v870 = vpop.f32.mrb[0].mxu0
      %v871 = vadd.f32 0.0, %v870
      %v872 = vpop.f32.mrb[0].mxu0
      %873 = vmatprep.mubr.bf16.mxu0 0
      %874 = vmatmul.mubr.bf16.gmra.mrb[0].mxu0 %v783
      %v875 = vpop.f32.mrb[0].mxu0
      %v876 = vadd.f32 0.0, %v875
      %v877 = vpop.f32.mrb[0].mxu0
      %v878 = vpop.f32.mrb[0].mxu0
      %v879 = vadd.f32 0.0, %v878
      %v880 = vpop.f32.mrb[0].mxu0
      %881 = vdwg.mxu0
      %v886 = vunpack.c.l.b16 %v724
      %v887 = vunpack.c.l.b16 %v725
      %v888 = vunpack.c.l.b16 %v726
      %v889 = vunpack.c.l.b16 %v727
      %v890 = vpack.c.b16 %v887, %v886
      %v891 = vpack.c.b16 %v889, %v888
      %v895 = vsel %vm354, %v716, 0
      %v898 = vsel %vm354, %v717, 0
      %v901 = vsel %vm354, %v718, 0
      %v904 = vsel %vm354, %v719, 0
      %v907 = vsel %vm354, %v720, 0
      %v910 = vsel %vm354, %v721, 0
      %v913 = vsel %vm354, %v722, 0
      %v916 = vsel %vm354, %v723, 0
      %918 = vmatprep.subr.bf16.mxu0 0
      %919 = vmatpush1.bf16.msra.mxu0 %v890
      %920 = vmatprep.subr.bf16.mxu0 0
      %921 = vmatpush1.bf16.msra.mxu0 %v891
      %922 = vmatprep.subr.bf16.mxu0 0
      %923 = vmatpush1.bf16.msra.mxu0 0
      %924 = vmatprep.subr.bf16.mxu0 0
      %925 = vmatpush1.bf16.msra.mxu0 0
      %926 = vmatprep.subr.bf16.mxu0 0
      %927 = vmatpush1.bf16.msra.mxu0 0
      %928 = vmatprep.subr.bf16.mxu0 0
      %929 = vmatpush1.bf16.msra.mxu0 0
      %930 = vmatprep.subr.bf16.mxu0 0
      %931 = vmatpush1.bf16.msra.mxu0 0
      %932 = vmatprep.subr.bf16.mxu0 0
      %933 = vmatpush1.bf16.msra.mxu0 0
      %934 = vmatprep.subr.bf16.mxu0 0
      %935 = vmatpush1.bf16.msra.mxu0 0
      %936 = vmatprep.subr.bf16.mxu0 0
      %937 = vmatpush1.bf16.msra.mxu0 0
      %938 = vmatprep.subr.bf16.mxu0 0
      %939 = vmatpush1.bf16.msra.mxu0 0
      %940 = vmatprep.subr.bf16.mxu0 0
      %941 = vmatpush1.bf16.msra.mxu0 0
      %942 = vmatprep.subr.bf16.mxu0 0
      %943 = vmatpush1.bf16.msra.mxu0 0
      %944 = vmatprep.subr.bf16.mxu0 0
      %945 = vmatpush1.bf16.msra.mxu0 0
      %946 = vmatprep.subr.bf16.mxu0 0
      %947 = vmatpush1.bf16.msra.mxu0 0
      %948 = vmatprep.subr.bf16.mxu0 0
      %949 = vmatpush1.bf16.msra.mxu0 0
      %950 = vmatprep.mubr.bf16.mxu0 0
      %951 = vmatmul.mubr.bf16.gmra.mrb[0].mxu0 %v895
      %v952 = vpop.f32.mrb[0].mxu0
      %v953 = vadd.f32 %v820, %v952
      %v954 = vpop.f32.mrb[0].mxu0
      %v955 = vpop.f32.mrb[0].mxu0
      %v956 = vadd.f32 %v823, %v955
      %v957 = vpop.f32.mrb[0].mxu0
      %958 = vmatprep.mubr.bf16.mxu0 0
      %959 = vmatmul.mubr.bf16.gmra.mrb[0].mxu0 %v898
      %v960 = vpop.f32.mrb[0].mxu0
      %v961 = vadd.f32 %v828, %v960
      %v962 = vpop.f32.mrb[0].mxu0
      %v963 = vpop.f32.mrb[0].mxu0
      %v964 = vadd.f32 %v831, %v963
      %v965 = vpop.f32.mrb[0].mxu0
      %966 = vmatprep.mubr.bf16.mxu0 0
      %967 = vmatmul.mubr.bf16.gmra.mrb[0].mxu0 %v901
      %v968 = vpop.f32.mrb[0].mxu0
      %v969 = vadd.f32 %v836, %v968
      %v970 = vpop.f32.mrb[0].mxu0
      %v971 = vpop.f32.mrb[0].mxu0
      %v972 = vadd.f32 %v839, %v971
      %v973 = vpop.f32.mrb[0].mxu0
      %974 = vmatprep.mubr.bf16.mxu0 0
      %975 = vmatmul.mubr.bf16.gmra.mrb[0].mxu0 %v904
      %v976 = vpop.f32.mrb[0].mxu0
      %v977 = vadd.f32 %v844, %v976
      %v978 = vpop.f32.mrb[0].mxu0
      %v979 = vpop.f32.mrb[0].mxu0
      %v980 = vadd.f32 %v847, %v979
      %v981 = vpop.f32.mrb[0].mxu0
      %982 = vmatprep.mubr.bf16.mxu0 0
      %983 = vmatmul.mubr.bf16.gmra.mrb[0].mxu0 %v907
      %v984 = vpop.f32.mrb[0].mxu0
      %v985 = vadd.f32 %v852, %v984
      %v986 = vpop.f32.mrb[0].mxu0
      %v987 = vpop.f32.mrb[0].mxu0
      %v988 = vadd.f32 %v855, %v987
      %v989 = vpop.f32.mrb[0].mxu0
      %990 = vmatprep.mubr.bf16.mxu0 0
      %991 = vmatmul.mubr.bf16.gmra.mrb[0].mxu0 %v910
      %v992 = vpop.f32.mrb[0].mxu0
      %v993 = vadd.f32 %v860, %v992
      %v994 = vpop.f32.mrb[0].mxu0
      %v995 = vpop.f32.mrb[0].mxu0
      %v996 = vadd.f32 %v863, %v995
      %v997 = vpop.f32.mrb[0].mxu0
      %998 = vmatprep.mubr.bf16.mxu0 0
      %999 = vmatmul.mubr.bf16.gmra.mrb[0].mxu0 %v913
      %v1000 = vpop.f32.mrb[0].mxu0
      %v1001 = vadd.f32 %v868, %v1000
      %v1002 = vpop.f32.mrb[0].mxu0
      %v1003 = vpop.f32.mrb[0].mxu0
      %v1004 = vadd.f32 %v871, %v1003
      %v1005 = vpop.f32.mrb[0].mxu0
      %1006 = vmatprep.mubr.bf16.mxu0 0
      %1007 = vmatmul.mubr.bf16.gmra.mrb[0].mxu0 %v916
      %v1008 = vpop.f32.mrb[0].mxu0
      %v1009 = vadd.f32 %v876, %v1008
      %v1010 = vpop.f32.mrb[0].mxu0
      %v1011 = vpop.f32.mrb[0].mxu0
      %v1012 = vadd.f32 %v879, %v1011
      %v1013 = vpop.f32.mrb[0].mxu0
      %1014 = vdwg.mxu0
      %v1015 = vlaneseq
      %v1016 = vshrl.u32 %v1015, 7
      %v1017 = vsub.s32 0, %v1016
      %v1018 = vrot.slane %v352, %v1017
      %v1019 = vadd.f32 %v953, %v1018
      %v1020 = vadd.f32 %v956, %v1018
      %v1021 = vadd.f32 %v961, %v1018
      %v1022 = vadd.f32 %v964, %v1018
      %v1023 = vadd.f32 %v969, %v1018
      %v1024 = vadd.f32 %v972, %v1018
      %v1025 = vadd.f32 %v977, %v1018
      %v1026 = vadd.f32 %v980, %v1018
      %v1027 = vadd.f32 %v985, %v1018
      %v1028 = vadd.f32 %v988, %v1018
      %v1029 = vadd.f32 %v993, %v1018
      %v1030 = vadd.f32 %v996, %v1018
      %v1031 = vadd.f32 %v1001, %v1018
      %v1032 = vadd.f32 %v1004, %v1018
      %v1033 = vadd.f32 %v1009, %v1018
      %v1034 = vadd.f32 %v1012, %v1018
      %vm1035 = vcmask 523264
      %v1036 = vsel %vm1035, %v1019, 0.0
      %1037 = vadd.xlane.f32.xlu0 %v1036
      %v1038 = vpop.xlane.xlu0 %1037
      %v1039 = vsel %vm1035, %v1020, 0.0
      %1040 = vadd.xlane.f32.xlu0 %v1039
      %v1041 = vpop.xlane.xlu0 %1040
      %v1042 = vsel %vm1035, %v1021, 0.0
      %1043 = vadd.xlane.f32.xlu0 %v1042
      %v1044 = vpop.xlane.xlu0 %1043
      %v1045 = vsel %vm1035, %v1022, 0.0
      %1046 = vadd.xlane.f32.xlu0 %v1045
      %v1047 = vpop.xlane.xlu0 %1046
      %v1048 = vsel %vm1035, %v1023, 0.0
      %1049 = vadd.xlane.f32.xlu0 %v1048
      %v1050 = vpop.xlane.xlu0 %1049
      %v1051 = vsel %vm1035, %v1024, 0.0
      %1052 = vadd.xlane.f32.xlu0 %v1051
      %v1053 = vpop.xlane.xlu0 %1052
      %v1054 = vsel %vm1035, %v1025, 0.0
      %1055 = vadd.xlane.f32.xlu0 %v1054
      %v1056 = vpop.xlane.xlu0 %1055
      %v1057 = vsel %vm1035, %v1026, 0.0
      %1058 = vadd.xlane.f32.xlu0 %v1057
      %v1059 = vpop.xlane.xlu0 %1058
      %v1060 = vsel %vm1035, %v1027, 0.0
      %1061 = vadd.xlane.f32.xlu0 %v1060
      %v1062 = vpop.xlane.xlu0 %1061
      %v1063 = vsel %vm1035, %v1028, 0.0
      %1064 = vadd.xlane.f32.xlu0 %v1063
      %v1065 = vpop.xlane.xlu0 %1064
      %v1066 = vsel %vm1035, %v1029, 0.0
      %1067 = vadd.xlane.f32.xlu0 %v1066
      %v1068 = vpop.xlane.xlu0 %1067
      %v1069 = vsel %vm1035, %v1030, 0.0
      %1070 = vadd.xlane.f32.xlu0 %v1069
      %v1071 = vpop.xlane.xlu0 %1070
      %v1072 = vsel %vm1035, %v1031, 0.0
      %1073 = vadd.xlane.f32.xlu0 %v1072
      %v1074 = vpop.xlane.xlu0 %1073
      %v1075 = vsel %vm1035, %v1032, 0.0
      %1076 = vadd.xlane.f32.xlu0 %v1075
      %v1077 = vpop.xlane.xlu0 %1076
      %v1078 = vsel %vm1035, %v1033, 0.0
      %1079 = vadd.xlane.f32.xlu0 %v1078
      %v1080 = vpop.xlane.xlu0 %1079
      %v1081 = vsel %vm1035, %v1034, 0.0
      %1082 = vadd.xlane.f32.xlu0 %v1081
      %v1083 = vpop.xlane.xlu0 %1082
      %v1084 = vrcp.pop 64.0
      %v1085 = vmul.f32 %v1038, %v1084
      %v1086 = vmul.f32 %v1041, %v1084
      %v1087 = vmul.f32 %v1044, %v1084
      %v1088 = vmul.f32 %v1047, %v1084
      %v1089 = vmul.f32 %v1050, %v1084
      %v1090 = vmul.f32 %v1053, %v1084
      %v1091 = vmul.f32 %v1056, %v1084
      %v1092 = vmul.f32 %v1059, %v1084
      %v1093 = vmul.f32 %v1062, %v1084
      %v1094 = vmul.f32 %v1065, %v1084
      %v1095 = vmul.f32 %v1068, %v1084
      %v1096 = vmul.f32 %v1071, %v1084
      %v1097 = vmul.f32 %v1074, %v1084
      %v1098 = vmul.f32 %v1077, %v1084
      %v1099 = vmul.f32 %v1080, %v1084
      %v1100 = vmul.f32 %v1083, %v1084
      %v1101 = vsub.f32 %v1019, %v1085
      %v1102 = vsub.f32 %v1020, %v1086
      %v1103 = vsub.f32 %v1021, %v1087
      %v1104 = vsub.f32 %v1022, %v1088
      %v1105 = vsub.f32 %v1023, %v1089
      %v1106 = vsub.f32 %v1024, %v1090
      %v1107 = vsub.f32 %v1025, %v1091
      %v1108 = vsub.f32 %v1026, %v1092
      %v1109 = vsub.f32 %v1027, %v1093
      %v1110 = vsub.f32 %v1028, %v1094
      %v1111 = vsub.f32 %v1029, %v1095
      %v1112 = vsub.f32 %v1030, %v1096
      %v1113 = vsub.f32 %v1031, %v1097
      %v1114 = vsub.f32 %v1032, %v1098
      %v1115 = vsub.f32 %v1033, %v1099
      %v1116 = vsub.f32 %v1034, %v1100
      %v1117 = vmul.f32 %v1101, %v1101
      %v1118 = vmul.f32 %v1102, %v1102
      %v1119 = vmul.f32 %v1103, %v1103
      %v1120 = vmul.f32 %v1104, %v1104
      %v1121 = vmul.f32 %v1105, %v1105
      %v1122 = vmul.f32 %v1106, %v1106
      %v1123 = vmul.f32 %v1107, %v1107
      %v1124 = vmul.f32 %v1108, %v1108
      %v1125 = vmul.f32 %v1109, %v1109
      %v1126 = vmul.f32 %v1110, %v1110
      %v1127 = vmul.f32 %v1111, %v1111
      %v1128 = vmul.f32 %v1112, %v1112
      %v1129 = vmul.f32 %v1113, %v1113
      %v1130 = vmul.f32 %v1114, %v1114
      %v1131 = vmul.f32 %v1115, %v1115
      %v1132 = vmul.f32 %v1116, %v1116
      %v1133 = vsel %vm1035, %v1117, 0.0
      %1134 = vadd.xlane.f32.xlu0 %v1133
      %v1135 = vpop.xlane.xlu0 %1134
      %v1136 = vsel %vm1035, %v1118, 0.0
      %1137 = vadd.xlane.f32.xlu0 %v1136
      %v1138 = vpop.xlane.xlu0 %1137
      %v1139 = vsel %vm1035, %v1119, 0.0
      %1140 = vadd.xlane.f32.xlu0 %v1139
      %v1141 = vpop.xlane.xlu0 %1140
      %v1142 = vsel %vm1035, %v1120, 0.0
      %1143 = vadd.xlane.f32.xlu0 %v1142
      %v1144 = vpop.xlane.xlu0 %1143
      %v1145 = vsel %vm1035, %v1121, 0.0
      %1146 = vadd.xlane.f32.xlu0 %v1145
      %v1147 = vpop.xlane.xlu0 %1146
      %v1148 = vsel %vm1035, %v1122, 0.0
      %1149 = vadd.xlane.f32.xlu0 %v1148
      %v1150 = vpop.xlane.xlu0 %1149
      %v1151 = vsel %vm1035, %v1123, 0.0
      %1152 = vadd.xlane.f32.xlu0 %v1151
      %v1153 = vpop.xlane.xlu0 %1152
      %v1154 = vsel %vm1035, %v1124, 0.0
      %1155 = vadd.xlane.f32.xlu0 %v1154
      %v1156 = vpop.xlane.xlu0 %1155
      %v1157 = vsel %vm1035, %v1125, 0.0
      %1158 = vadd.xlane.f32.xlu0 %v1157
      %v1159 = vpop.xlane.xlu0 %1158
      %v1160 = vsel %vm1035, %v1126, 0.0
      %1161 = vadd.xlane.f32.xlu0 %v1160
      %v1162 = vpop.xlane.xlu0 %1161
      %v1163 = vsel %vm1035, %v1127, 0.0
      %1164 = vadd.xlane.f32.xlu0 %v1163
      %v1165 = vpop.xlane.xlu0 %1164
      %v1166 = vsel %vm1035, %v1128, 0.0
      %1167 = vadd.xlane.f32.xlu0 %v1166
      %v1168 = vpop.xlane.xlu0 %1167
      %v1169 = vsel %vm1035, %v1129, 0.0
      %1170 = vadd.xlane.f32.xlu0 %v1169
      %v1171 = vpop.xlane.xlu0 %1170
      %v1172 = vsel %vm1035, %v1130, 0.0
      %1173 = vadd.xlane.f32.xlu0 %v1172
      %v1174 = vpop.xlane.xlu0 %1173
      %v1175 = vsel %vm1035, %v1131, 0.0
      %1176 = vadd.xlane.f32.xlu0 %v1175
      %v1177 = vpop.xlane.xlu0 %1176
      %v1178 = vsel %vm1035, %v1132, 0.0
      %1179 = vadd.xlane.f32.xlu0 %v1178
      %v1180 = vpop.xlane.xlu0 %1179
      %v1181 = vmul.f32 %v1135, %v1084
      %v1182 = vmul.f32 %v1138, %v1084
      %v1183 = vmul.f32 %v1141, %v1084
      %v1184 = vmul.f32 %v1144, %v1084
      %v1185 = vmul.f32 %v1147, %v1084
      %v1186 = vmul.f32 %v1150, %v1084
      %v1187 = vmul.f32 %v1153, %v1084
      %v1188 = vmul.f32 %v1156, %v1084
      %v1189 = vmul.f32 %v1159, %v1084
      %v1190 = vmul.f32 %v1162, %v1084
      %v1191 = vmul.f32 %v1165, %v1084
      %v1192 = vmul.f32 %v1168, %v1084
      %v1193 = vmul.f32 %v1171, %v1084
      %v1194 = vmul.f32 %v1174, %v1084
      %v1195 = vmul.f32 %v1177, %v1084
      %v1196 = vmul.f32 %v1180, %v1084
      %v1197 = vadd.f32 %v1181, 1e-05
      %v1198 = vadd.f32 %v1182, 1e-05
      %v1199 = vadd.f32 %v1183, 1e-05
      %v1200 = vadd.f32 %v1184, 1e-05
      %v1201 = vadd.f32 %v1185, 1e-05
      %v1202 = vadd.f32 %v1186, 1e-05
      %v1203 = vadd.f32 %v1187, 1e-05
      %v1204 = vadd.f32 %v1188, 1e-05
      %v1205 = vadd.f32 %v1189, 1e-05
      %v1206 = vadd.f32 %v1190, 1e-05
      %v1207 = vadd.f32 %v1191, 1e-05
      %v1208 = vadd.f32 %v1192, 1e-05
      %v1209 = vadd.f32 %v1193, 1e-05
      %v1210 = vadd.f32 %v1194, 1e-05
      %v1211 = vadd.f32 %v1195, 1e-05
      %v1212 = vadd.f32 %v1196, 1e-05
      %v1213 = vrsqrt.pop %v1197
      %v1214 = vrsqrt.pop %v1198
      %v1215 = vrsqrt.pop %v1199
      %v1216 = vrsqrt.pop %v1200
      %v1217 = vrsqrt.pop %v1201
      %v1218 = vrsqrt.pop %v1202
      %v1219 = vrsqrt.pop %v1203
      %v1220 = vrsqrt.pop %v1204
      %v1221 = vrsqrt.pop %v1205
      %v1222 = vrsqrt.pop %v1206
      %v1223 = vrsqrt.pop %v1207
      %v1224 = vrsqrt.pop %v1208
      %v1225 = vrsqrt.pop %v1209
      %v1226 = vrsqrt.pop %v1210
      %v1227 = vrsqrt.pop %v1211
      %v1228 = vrsqrt.pop %v1212
      %v1229 = vmul.f32 %v1101, %v1213
      %v1230 = vmul.f32 %v1102, %v1214
      %v1231 = vmul.f32 %v1103, %v1215
      %v1232 = vmul.f32 %v1104, %v1216
      %v1233 = vmul.f32 %v1105, %v1217
      %v1234 = vmul.f32 %v1106, %v1218
      %v1235 = vmul.f32 %v1107, %v1219
      %v1236 = vmul.f32 %v1108, %v1220
      %v1237 = vmul.f32 %v1109, %v1221
      %v1238 = vmul.f32 %v1110, %v1222
      %v1239 = vmul.f32 %v1111, %v1223
      %v1240 = vmul.f32 %v1112, %v1224
      %v1241 = vmul.f32 %v1113, %v1225
      %v1242 = vmul.f32 %v1114, %v1226
      %v1243 = vmul.f32 %v1115, %v1227
      %v1244 = vmul.f32 %v1116, %v1228
      %v1245 = vlaneseq
      %v1246 = vshrl.u32 %v1245, 7
      %v1247 = vsub.s32 0, %v1246
      %v1248 = vrot.slane %v350, %v1247
      %v1249 = vmul.f32 %v1229, %v1248
      %v1250 = vmul.f32 %v1230, %v1248
      %v1251 = vmul.f32 %v1231, %v1248
      %v1252 = vmul.f32 %v1232, %v1248
      %v1253 = vmul.f32 %v1233, %v1248
      %v1254 = vmul.f32 %v1234, %v1248
      %v1255 = vmul.f32 %v1235, %v1248
      %v1256 = vmul.f32 %v1236, %v1248
      %v1257 = vmul.f32 %v1237, %v1248
      %v1258 = vmul.f32 %v1238, %v1248
      %v1259 = vmul.f32 %v1239, %v1248
      %v1260 = vmul.f32 %v1240, %v1248
      %v1261 = vmul.f32 %v1241, %v1248
      %v1262 = vmul.f32 %v1242, %v1248
      %v1263 = vmul.f32 %v1243, %v1248
      %v1264 = vmul.f32 %v1244, %v1248
      %v1265 = vlaneseq
      %v1266 = vshrl.u32 %v1265, 7
      %v1267 = vsub.s32 0, %v1266
      %v1268 = vrot.slane %v351, %v1267
      %v1269 = vadd.f32 %v1249, %v1268
      %v1270 = vadd.f32 %v1250, %v1268
      %v1271 = vadd.f32 %v1251, %v1268
      %v1272 = vadd.f32 %v1252, %v1268
      %v1273 = vadd.f32 %v1253, %v1268
      %v1274 = vadd.f32 %v1254, %v1268
      %v1275 = vadd.f32 %v1255, %v1268
      %v1276 = vadd.f32 %v1256, %v1268
      %v1277 = vadd.f32 %v1257, %v1268
      %v1278 = vadd.f32 %v1258, %v1268
      %v1279 = vadd.f32 %v1259, %v1268
      %v1280 = vadd.f32 %v1260, %v1268
      %v1281 = vadd.f32 %v1261, %v1268
      %v1282 = vadd.f32 %v1262, %v1268
      %v1283 = vadd.f32 %v1263, %v1268
      %v1284 = vadd.f32 %v1264, %v1268
      %v1285 = vxor.u32 %v1269, 2147483648
      %v1286 = vxor.u32 %v1270, 2147483648
      %v1287 = vxor.u32 %v1271, 2147483648
      %v1288 = vxor.u32 %v1272, 2147483648
      %v1289 = vxor.u32 %v1273, 2147483648
      %v1290 = vxor.u32 %v1274, 2147483648
      %v1291 = vxor.u32 %v1275, 2147483648
      %v1292 = vxor.u32 %v1276, 2147483648
      %v1293 = vxor.u32 %v1277, 2147483648
      %v1294 = vxor.u32 %v1278, 2147483648
      %v1295 = vxor.u32 %v1279, 2147483648
      %v1296 = vxor.u32 %v1280, 2147483648
      %v1297 = vxor.u32 %v1281, 2147483648
      %v1298 = vxor.u32 %v1282, 2147483648
      %v1299 = vxor.u32 %v1283, 2147483648
      %v1300 = vxor.u32 %v1284, 2147483648
      %v1301 = vmul.f32 %v1285, 1.442695
      %v1302 = vpow.pop %v1301
      %v1303 = vmul.f32 %v1286, 1.442695
      %v1304 = vpow.pop %v1303
      %v1305 = vmul.f32 %v1287, 1.442695
      %v1306 = vpow.pop %v1305
      %v1307 = vmul.f32 %v1288, 1.442695
      %v1308 = vpow.pop %v1307
      %v1309 = vmul.f32 %v1289, 1.442695
      %v1310 = vpow.pop %v1309
      %v1311 = vmul.f32 %v1290, 1.442695
      %v1312 = vpow.pop %v1311
      %v1313 = vmul.f32 %v1291, 1.442695
      %v1314 = vpow.pop %v1313
      %v1315 = vmul.f32 %v1292, 1.442695
      %v1316 = vpow.pop %v1315
      %v1317 = vmul.f32 %v1293, 1.442695
      %v1318 = vpow.pop %v1317
      %v1319 = vmul.f32 %v1294, 1.442695
      %v1320 = vpow.pop %v1319
      %v1321 = vmul.f32 %v1295, 1.442695
      %v1322 = vpow.pop %v1321
      %v1323 = vmul.f32 %v1296, 1.442695
      %v1324 = vpow.pop %v1323
      %v1325 = vmul.f32 %v1297, 1.442695
      %v1326 = vpow.pop %v1325
      %v1327 = vmul.f32 %v1298, 1.442695
      %v1328 = vpow.pop %v1327
      %v1329 = vmul.f32 %v1299, 1.442695
      %v1330 = vpow.pop %v1329
      %v1331 = vmul.f32 %v1300, 1.442695
      %v1332 = vpow.pop %v1331
      %v1333 = vadd.f32 %v1302, 1.0
      %v1334 = vadd.f32 %v1304, 1.0
      %v1335 = vadd.f32 %v1306, 1.0
      %v1336 = vadd.f32 %v1308, 1.0
      %v1337 = vadd.f32 %v1310, 1.0
      %v1338 = vadd.f32 %v1312, 1.0
      %v1339 = vadd.f32 %v1314, 1.0
      %v1340 = vadd.f32 %v1316, 1.0
      %v1341 = vadd.f32 %v1318, 1.0
      %v1342 = vadd.f32 %v1320, 1.0
      %v1343 = vadd.f32 %v1322, 1.0
      %v1344 = vadd.f32 %v1324, 1.0
      %v1345 = vadd.f32 %v1326, 1.0
      %v1346 = vadd.f32 %v1328, 1.0
      %v1347 = vadd.f32 %v1330, 1.0
      %v1348 = vadd.f32 %v1332, 1.0
      %v1349 = vrcp.pop %v1333
      %v1350 = vmul.f32 1.0, %v1349
      %v1351 = vrcp.pop %v1334
      %v1352 = vmul.f32 1.0, %v1351
      %v1353 = vrcp.pop %v1335
      %v1354 = vmul.f32 1.0, %v1353
      %v1355 = vrcp.pop %v1336
      %v1356 = vmul.f32 1.0, %v1355
      %v1357 = vrcp.pop %v1337
      %v1358 = vmul.f32 1.0, %v1357
      %v1359 = vrcp.pop %v1338
      %v1360 = vmul.f32 1.0, %v1359
      %v1361 = vrcp.pop %v1339
      %v1362 = vmul.f32 1.0, %v1361
      %v1363 = vrcp.pop %v1340
      %v1364 = vmul.f32 1.0, %v1363
      %v1365 = vrcp.pop %v1341
      %v1366 = vmul.f32 1.0, %v1365
      %v1367 = vrcp.pop %v1342
      %v1368 = vmul.f32 1.0, %v1367
      %v1369 = vrcp.pop %v1343
      %v1370 = vmul.f32 1.0, %v1369
      %v1371 = vrcp.pop %v1344
      %v1372 = vmul.f32 1.0, %v1371
      %v1373 = vrcp.pop %v1345
      %v1374 = vmul.f32 1.0, %v1373
      %v1375 = vrcp.pop %v1346
      %v1376 = vmul.f32 1.0, %v1375
      %v1377 = vrcp.pop %v1347
      %v1378 = vmul.f32 1.0, %v1377
      %v1379 = vrcp.pop %v1348
      %v1380 = vmul.f32 1.0, %v1379
      %v1381 = vmul.f32 %v1269, %v1350
      %v1382 = vmul.f32 %v1270, %v1352
      %v1383 = vmul.f32 %v1271, %v1354
      %v1384 = vmul.f32 %v1272, %v1356
      %v1385 = vmul.f32 %v1273, %v1358
      %v1386 = vmul.f32 %v1274, %v1360
      %v1387 = vmul.f32 %v1275, %v1362
      %v1388 = vmul.f32 %v1276, %v1364
      %v1389 = vmul.f32 %v1277, %v1366
      %v1390 = vmul.f32 %v1278, %v1368
      %v1391 = vmul.f32 %v1279, %v1370
      %v1392 = vmul.f32 %v1280, %v1372
      %v1393 = vmul.f32 %v1281, %v1374
      %v1394 = vmul.f32 %v1282, %v1376
      %v1395 = vmul.f32 %v1283, %v1378
      %v1396 = vmul.f32 %v1284, %v1380
      %v1397 = vpack.c.bf16 %v1382, %v1381
      %v1398 = vpack.c.bf16 %v1384, %v1383
      %v1399 = vpack.c.bf16 %v1386, %v1385
      %v1400 = vpack.c.bf16 %v1388, %v1387
      %v1401 = vpack.c.bf16 %v1390, %v1389
      %v1402 = vpack.c.bf16 %v1392, %v1391
      %v1403 = vpack.c.bf16 %v1394, %v1393
      %v1404 = vpack.c.bf16 %v1396, %v1395
      %v1405 = vld [vmem:[%s6] sm:$0xf]
      %v1406 = vld [vmem:[%s6 + $0x4] sm:$0xf]
      %v1407 = vld [vmem:[%s6 + $0x8] sm:$0xf]
      %v1408 = vld [vmem:[%s6 + $0xc] sm:$0xf]
      %v1409 = vld [vmem:[%s6 + $0x10] sm:$0xf]
      %v1410 = vld [vmem:[%s6 + $0x14] sm:$0xf]
      %v1411 = vld [vmem:[%s6 + $0x18] sm:$0xf]
      %v1412 = vld [vmem:[%s6 + $0x1c] sm:$0xf]
      %v1413 = vlaneseq
      %v1414 = vshrl.u32 %v1413, 7
      %v1415 = vsub.s32 0, %v1414
      %v1416 = vrot.slane %v353, %v1415
      %v1425 = vunpack.c.l.b16 %v1405
      %v1426 = vunpack.c.l.b16 %v1406
      %v1427 = vunpack.c.l.b16 %v1407
      %v1428 = vunpack.c.l.b16 %v1408
      %v1429 = vunpack.c.l.b16 %v1409
      %v1430 = vunpack.c.l.b16 %v1410
      %v1431 = vunpack.c.l.b16 %v1411
      %v1432 = vunpack.c.l.b16 %v1412
      %v1433 = vpack.c.b16 %v1426, %v1425
      %v1434 = vpack.c.b16 %v1428, %v1427
      %v1435 = vpack.c.b16 %v1430, %v1429
      %v1436 = vpack.c.b16 %v1432, %v1431
      %v1442 = vsel %vm1035, %v1397, 0
      %v1445 = vsel %vm1035, %v1398, 0
      %v1448 = vsel %vm1035, %v1399, 0
      %v1451 = vsel %vm1035, %v1400, 0
      %v1454 = vsel %vm1035, %v1401, 0
      %v1457 = vsel %vm1035, %v1402, 0
      %v1460 = vsel %vm1035, %v1403, 0
      %v1463 = vsel %vm1035, %v1404, 0
      %1465 = vmatprep.subr.bf16.mxu0 0
      %1466 = vmatpush1.bf16.msra.mxu0 %v1433
      %1467 = vmatprep.subr.bf16.mxu0 0
      %1468 = vmatpush1.bf16.msra.mxu0 %v1434
      %1469 = vmatprep.subr.bf16.mxu0 0
      %1470 = vmatpush1.bf16.msra.mxu0 %v1435
      %1471 = vmatprep.subr.bf16.mxu0 0
      %1472 = vmatpush1.bf16.msra.mxu0 %v1436
      %1473 = vmatprep.subr.bf16.mxu0 0
      %1474 = vmatpush1.bf16.msra.mxu0 0
      %1475 = vmatprep.subr.bf16.mxu0 0
      %1476 = vmatpush1.bf16.msra.mxu0 0
      %1477 = vmatprep.subr.bf16.mxu0 0
      %1478 = vmatpush1.bf16.msra.mxu0 0
      %1479 = vmatprep.subr.bf16.mxu0 0
      %1480 = vmatpush1.bf16.msra.mxu0 0
      %1481 = vmatprep.subr.bf16.mxu0 0
      %1482 = vmatpush1.bf16.msra.mxu0 0
      %1483 = vmatprep.subr.bf16.mxu0 0
      %1484 = vmatpush1.bf16.msra.mxu0 0
      %1485 = vmatprep.subr.bf16.mxu0 0
      %1486 = vmatpush1.bf16.msra.mxu0 0
      %1487 = vmatprep.subr.bf16.mxu0 0
      %1488 = vmatpush1.bf16.msra.mxu0 0
      %1489 = vmatprep.subr.bf16.mxu0 0
      %1490 = vmatpush1.bf16.msra.mxu0 0
      %1491 = vmatprep.subr.bf16.mxu0 0
      %1492 = vmatpush1.bf16.msra.mxu0 0
      %1493 = vmatprep.subr.bf16.mxu0 0
      %1494 = vmatpush1.bf16.msra.mxu0 0
      %1495 = vmatprep.subr.bf16.mxu0 0
      %1496 = vmatpush1.bf16.msra.mxu0 0
      %1497 = vmatprep.mubr.bf16.mxu0 0
      %1498 = vmatmul.mubr.bf16.gmra.mrb[0].mxu0 %v1442
      %v1499 = vpop.f32.mrb[0].mxu0
      %v1500 = vadd.f32 %v1416, %v1499
      %v1501 = vpop.f32.mrb[0].mxu0
      %v1502 = vpop.f32.mrb[0].mxu0
      %v1503 = vadd.f32 %v1416, %v1502
      %v1504 = vpop.f32.mrb[0].mxu0
      %1505 = vmatprep.mubr.bf16.mxu0 0
      %1506 = vmatmul.mubr.bf16.gmra.mrb[0].mxu0 %v1445
      %v1507 = vpop.f32.mrb[0].mxu0
      %v1508 = vadd.f32 %v1416, %v1507
      %v1509 = vpop.f32.mrb[0].mxu0
      %v1510 = vpop.f32.mrb[0].mxu0
      %v1511 = vadd.f32 %v1416, %v1510
      %v1512 = vpop.f32.mrb[0].mxu0
      %1513 = vmatprep.mubr.bf16.mxu0 0
      %1514 = vmatmul.mubr.bf16.gmra.mrb[0].mxu0 %v1448
      %v1515 = vpop.f32.mrb[0].mxu0
      %v1516 = vadd.f32 %v1416, %v1515
      %v1517 = vpop.f32.mrb[0].mxu0
      %v1518 = vpop.f32.mrb[0].mxu0
      %v1519 = vadd.f32 %v1416, %v1518
      %v1520 = vpop.f32.mrb[0].mxu0
      %1521 = vmatprep.mubr.bf16.mxu0 0
      %1522 = vmatmul.mubr.bf16.gmra.mrb[0].mxu0 %v1451
      %v1523 = vpop.f32.mrb[0].mxu0
      %v1524 = vadd.f32 %v1416, %v1523
      %v1525 = vpop.f32.mrb[0].mxu0
      %v1526 = vpop.f32.mrb[0].mxu0
      %v1527 = vadd.f32 %v1416, %v1526
      %v1528 = vpop.f32.mrb[0].mxu0
      %1529 = vmatprep.mubr.bf16.mxu0 0
      %1530 = vmatmul.mubr.bf16.gmra.mrb[0].mxu0 %v1454
      %v1531 = vpop.f32.mrb[0].mxu0
      %v1532 = vadd.f32 %v1416, %v1531
      %v1533 = vpop.f32.mrb[0].mxu0
      %v1534 = vpop.f32.mrb[0].mxu0
      %v1535 = vadd.f32 %v1416, %v1534
      %v1536 = vpop.f32.mrb[0].mxu0
      %1537 = vmatprep.mubr.bf16.mxu0 0
      %1538 = vmatmul.mubr.bf16.gmra.mrb[0].mxu0 %v1457
      %v1539 = vpop.f32.mrb[0].mxu0
      %v1540 = vadd.f32 %v1416, %v1539
      %v1541 = vpop.f32.mrb[0].mxu0
      %v1542 = vpop.f32.mrb[0].mxu0
      %v1543 = vadd.f32 %v1416, %v1542
      %v1544 = vpop.f32.mrb[0].mxu0
      %1545 = vmatprep.mubr.bf16.mxu0 0
      %1546 = vmatmul.mubr.bf16.gmra.mrb[0].mxu0 %v1460
      %v1547 = vpop.f32.mrb[0].mxu0
      %v1548 = vadd.f32 %v1416, %v1547
      %v1549 = vpop.f32.mrb[0].mxu0
      %v1550 = vpop.f32.mrb[0].mxu0
      %v1551 = vadd.f32 %v1416, %v1550
      %v1552 = vpop.f32.mrb[0].mxu0
      %1553 = vmatprep.mubr.bf16.mxu0 0
      %1554 = vmatmul.mubr.bf16.gmra.mrb[0].mxu0 %v1463
      %v1555 = vpop.f32.mrb[0].mxu0
      %v1556 = vadd.f32 %v1416, %v1555
      %v1557 = vpop.f32.mrb[0].mxu0
      %v1558 = vpop.f32.mrb[0].mxu0
      %v1559 = vadd.f32 %v1416, %v1558
      %v1560 = vpop.f32.mrb[0].mxu0
      %1561 = vdwg.mxu0
      %v1562 = vpack.c.bf16 %v333, %v332
      %v1563 = vpack.c.bf16 %v335, %v334
      %v1564 = vpack.c.bf16 %v337, %v336
      %v1565 = vpack.c.bf16 %v339, %v338
      %v1566 = vpack.c.bf16 %v341, %v340
      %v1567 = vpack.c.bf16 %v343, %v342
      %v1568 = vpack.c.bf16 %v345, %v344
      %v1569 = vpack.c.bf16 %v347, %v346
      %v1570 = vld [vmem:[%s7] sm:$0xf]
      %v1571 = vld [vmem:[%s7 + $0x4] sm:$0xf]
      %v1572 = vld [vmem:[%s7 + $0x8] sm:$0xf]
      %v1573 = vld [vmem:[%s7 + $0xc] sm:$0xf]
      %v1578 = vunpack.c.l.b16 %v1570
      %v1579 = vunpack.c.l.b16 %v1571
      %v1580 = vunpack.c.l.b16 %v1572
      %v1581 = vunpack.c.l.b16 %v1573
      %v1582 = vpack.c.b16 %v1579, %v1578
      %v1583 = vpack.c.b16 %v1581, %v1580
      %v1587 = vsel %vm354, %v1562, 0
      %v1590 = vsel %vm354, %v1563, 0
      %v1593 = vsel %vm354, %v1564, 0
      %v1596 = vsel %vm354, %v1565, 0
      %v1599 = vsel %vm354, %v1566, 0
      %v1602 = vsel %vm354, %v1567, 0
      %v1605 = vsel %vm354, %v1568, 0
      %v1608 = vsel %vm354, %v1569, 0
      %1610 = vmatprep.subr.bf16.mxu0 0
      %1611 = vmatpush1.bf16.msra.mxu0 %v1582
      %1612 = vmatprep.subr.bf16.mxu0 0
      %1613 = vmatpush1.bf16.msra.mxu0 %v1583
      %1614 = vmatprep.subr.bf16.mxu0 0
      %1615 = vmatpush1.bf16.msra.mxu0 0
      %1616 = vmatprep.subr.bf16.mxu0 0
      %1617 = vmatpush1.bf16.msra.mxu0 0
      %1618 = vmatprep.subr.bf16.mxu0 0
      %1619 = vmatpush1.bf16.msra.mxu0 0
      %1620 = vmatprep.subr.bf16.mxu0 0
      %1621 = vmatpush1.bf16.msra.mxu0 0
      %1622 = vmatprep.subr.bf16.mxu0 0
      %1623 = vmatpush1.bf16.msra.mxu0 0
      %1624 = vmatprep.subr.bf16.mxu0 0
      %1625 = vmatpush1.bf16.msra.mxu0 0
      %1626 = vmatprep.subr.bf16.mxu0 0
      %1627 = vmatpush1.bf16.msra.mxu0 0
      %1628 = vmatprep.subr.bf16.mxu0 0
      %1629 = vmatpush1.bf16.msra.mxu0 0
      %1630 = vmatprep.subr.bf16.mxu0 0
      %1631 = vmatpush1.bf16.msra.mxu0 0
      %1632 = vmatprep.subr.bf16.mxu0 0
      %1633 = vmatpush1.bf16.msra.mxu0 0
      %1634 = vmatprep.subr.bf16.mxu0 0
      %1635 = vmatpush1.bf16.msra.mxu0 0
      %1636 = vmatprep.subr.bf16.mxu0 0
      %1637 = vmatpush1.bf16.msra.mxu0 0
      %1638 = vmatprep.subr.bf16.mxu0 0
      %1639 = vmatpush1.bf16.msra.mxu0 0
      %1640 = vmatprep.subr.bf16.mxu0 0
      %1641 = vmatpush1.bf16.msra.mxu0 0
      %1642 = vmatprep.mubr.bf16.mxu0 0
      %1643 = vmatmul.mubr.bf16.gmra.mrb[0].mxu0 %v1587
      %v1644 = vpop.f32.mrb[0].mxu0
      %v1645 = vadd.f32 0.0, %v1644
      %v1646 = vpop.f32.mrb[0].mxu0
      %v1647 = vpop.f32.mrb[0].mxu0
      %v1648 = vadd.f32 0.0, %v1647
      %v1649 = vpop.f32.mrb[0].mxu0
      %1650 = vmatprep.mubr.bf16.mxu0 0
      %1651 = vmatmul.mubr.bf16.gmra.mrb[0].mxu0 %v1590
      %v1652 = vpop.f32.mrb[0].mxu0
      %v1653 = vadd.f32 0.0, %v1652
      %v1654 = vpop.f32.mrb[0].mxu0
      %v1655 = vpop.f32.mrb[0].mxu0
      %v1656 = vadd.f32 0.0, %v1655
      %v1657 = vpop.f32.mrb[0].mxu0
      %1658 = vmatprep.mubr.bf16.mxu0 0
      %1659 = vmatmul.mubr.bf16.gmra.mrb[0].mxu0 %v1593
      %v1660 = vpop.f32.mrb[0].mxu0
      %v1661 = vadd.f32 0.0, %v1660
      %v1662 = vpop.f32.mrb[0].mxu0
      %v1663 = vpop.f32.mrb[0].mxu0
      %v1664 = vadd.f32 0.0, %v1663
      %v1665 = vpop.f32.mrb[0].mxu0
      %1666 = vmatprep.mubr.bf16.mxu0 0
      %1667 = vmatmul.mubr.bf16.gmra.mrb[0].mxu0 %v1596
      %v1668 = vpop.f32.mrb[0].mxu0
      %v1669 = vadd.f32 0.0, %v1668
      %v1670 = vpop.f32.mrb[0].mxu0
      %v1671 = vpop.f32.mrb[0].mxu0
      %v1672 = vadd.f32 0.0, %v1671
      %v1673 = vpop.f32.mrb[0].mxu0
      %1674 = vmatprep.mubr.bf16.mxu0 0
      %1675 = vmatmul.mubr.bf16.gmra.mrb[0].mxu0 %v1599
      %v1676 = vpop.f32.mrb[0].mxu0
      %v1677 = vadd.f32 0.0, %v1676
      %v1678 = vpop.f32.mrb[0].mxu0
      %v1679 = vpop.f32.mrb[0].mxu0
      %v1680 = vadd.f32 0.0, %v1679
      %v1681 = vpop.f32.mrb[0].mxu0
      %1682 = vmatprep.mubr.bf16.mxu0 0
      %1683 = vmatmul.mubr.bf16.gmra.mrb[0].mxu0 %v1602
      %v1684 = vpop.f32.mrb[0].mxu0
      %v1685 = vadd.f32 0.0, %v1684
      %v1686 = vpop.f32.mrb[0].mxu0
      %v1687 = vpop.f32.mrb[0].mxu0
      %v1688 = vadd.f32 0.0, %v1687
      %v1689 = vpop.f32.mrb[0].mxu0
      %1690 = vmatprep.mubr.bf16.mxu0 0
      %1691 = vmatmul.mubr.bf16.gmra.mrb[0].mxu0 %v1605
      %v1692 = vpop.f32.mrb[0].mxu0
      %v1693 = vadd.f32 0.0, %v1692
      %v1694 = vpop.f32.mrb[0].mxu0
      %v1695 = vpop.f32.mrb[0].mxu0
      %v1696 = vadd.f32 0.0, %v1695
      %v1697 = vpop.f32.mrb[0].mxu0
      %1698 = vmatprep.mubr.bf16.mxu0 0
      %1699 = vmatmul.mubr.bf16.gmra.mrb[0].mxu0 %v1608
      %v1700 = vpop.f32.mrb[0].mxu0
      %v1701 = vadd.f32 0.0, %v1700
      %v1702 = vpop.f32.mrb[0].mxu0
      %v1703 = vpop.f32.mrb[0].mxu0
      %v1704 = vadd.f32 0.0, %v1703
      %v1705 = vpop.f32.mrb[0].mxu0
      %1706 = vdwg.mxu0
      %v1707 = vadd.f32 %v1500, %v1645
      %v1708 = vadd.f32 %v1503, %v1648
      %v1709 = vadd.f32 %v1508, %v1653
      %v1710 = vadd.f32 %v1511, %v1656
      %v1711 = vadd.f32 %v1516, %v1661
      %v1712 = vadd.f32 %v1519, %v1664
      %v1713 = vadd.f32 %v1524, %v1669
      %v1714 = vadd.f32 %v1527, %v1672
      %v1715 = vadd.f32 %v1532, %v1677
      %v1716 = vadd.f32 %v1535, %v1680
      %v1717 = vadd.f32 %v1540, %v1685
      %v1718 = vadd.f32 %v1543, %v1688
      %v1719 = vadd.f32 %v1548, %v1693
      %v1720 = vadd.f32 %v1551, %v1696
      %v1721 = vadd.f32 %v1556, %v1701
      %v1722 = vadd.f32 %v1559, %v1704
      %1723 = vst.msk [vmem:[%s329] sm:$0xff] %vm1035, %v1707
      %1724 = vst.msk [vmem:[%s329 + $0x8] sm:$0xff] %vm1035, %v1708
      %1725 = vst.msk [vmem:[%s329 + $0x10] sm:$0xff] %vm1035, %v1709
      %1726 = vst.msk [vmem:[%s329 + $0x18] sm:$0xff] %vm1035, %v1710
      %1727 = vst.msk [vmem:[%s329 + $0x20] sm:$0xff] %vm1035, %v1711
      %1728 = vst.msk [vmem:[%s329 + $0x28] sm:$0xff] %vm1035, %v1712
      %1729 = vst.msk [vmem:[%s329 + $0x30] sm:$0xff] %vm1035, %v1713
      %1730 = vst.msk [vmem:[%s329 + $0x38] sm:$0xff] %vm1035, %v1714
      %1731 = vst.msk [vmem:[%s329 + $0x40] sm:$0xff] %vm1035, %v1715
      %1732 = vst.msk [vmem:[%s329 + $0x48] sm:$0xff] %vm1035, %v1716
      %1733 = vst.msk [vmem:[%s329 + $0x50] sm:$0xff] %vm1035, %v1717
      %1734 = vst.msk [vmem:[%s329 + $0x58] sm:$0xff] %vm1035, %v1718
      %1735 = vst.msk [vmem:[%s329 + $0x60] sm:$0xff] %vm1035, %v1719
      %1736 = vst.msk [vmem:[%s329 + $0x68] sm:$0xff] %vm1035, %v1720
      %1737 = vst.msk [vmem:[%s329 + $0x70] sm:$0xff] %vm1035, %v1721
      %1738 = vst.msk [vmem:[%s329 + $0x78] sm:$0xff] %vm1035, %v1722
      %s1739 = smul.u32 16, %s19
      %p1740 = scmp.lt.s32.totalorder %s1739, 31
      %s1741 = scalar_select %p1740, %s1739, 31
      %s1742 = smul.addr %s1741, 8
      %s1743 = scalar_lea.vmem %s8, %s1742
      // Predicated region
      $region53: #{tpu_custom_call.1} parent=51 // pred_check
        %p1744 = pneg %p215
      $region54: #{tpu_custom_call.1} parent=51 // pred_check_branch
        %1746 = sbr.rel (%p1744) target = $region56
      $region55: #{tpu_custom_call.1} parent=51 // pred_region
        %s1747 = smul.u32 16, %s19
      $region56: #{tpu_custom_call.1} parent=51 // pred_fallthru
        _
    $region52: #{tpu_custom_call.1} parent=5 // pred_fallthru
      _
    %p1748 = scmp.le.s32.totalorder 2, %s14
    // Predicated region
    $region57: #{tpu_custom_call.1} parent=5 // pred_check
      %p1749 = pneg %p1748
    $region58: #{tpu_custom_call.1} parent=5 // pred_check_branch
      %1751 = sbr.rel (%p1749) target = $region60
    $region59: #{tpu_custom_call.1} parent=5 // pred_region
      %s1752 = ssub.s32 %s14, 2
      // Predicated region
      $region61: #{tpu_custom_call.1} parent=59 // pred_check
        %p1753 = pneg %p221
      $region62: #{tpu_custom_call.1} parent=59 // pred_check_branch
        %1755 = sbr.rel (%p1753) target = $region64
      $region63: #{tpu_custom_call.1} parent=59 // pred_region
        %s1756 = smul.u32 16, %s20
        %p1757 = scmp.lt.s32.totalorder %s1756, 31
        %s1758 = scalar_select %p1757, %s1756, 31
        %s1759 = smul.addr %s1758, 8
        %s1760 = scalar_lea.vmem %s8, %s1759
      $region64: #{tpu_custom_call.1} parent=59 // pred_fallthru
        _
    $region60: #{tpu_custom_call.1} parent=5 // pred_fallthru
      _
  $region6: #{tpu_custom_call.1} parent=0 // loop_footer
    %s18 = sadd.s32 1, %s14
  $region7: #{tpu_custom_call.1} parent=0 // loop_footer_branch
    %13 = sbr.rel target = $region3
  $region8: #{tpu_custom_call.1} parent=0 // loop_exit
    _

</llo_original>
